<compile_context>
chip_gen: v5e
topology: v5e:2x2
jax: 0.10.0
libtpu: 0.0.40
codegen_flags: <defaults>
</compile_context>

<pallas_src>
import jax
import jax.numpy as jnp
from jax import lax
from jax.experimental import pallas as pl
from jax.experimental.pallas import tpu as pltpu


def _round_up(x, m):
    return (x + m - 1) // m * m


def _make_block_kernel(H, W, Cin_p, Cout, has_scale_shift):
    Wp = W + 2                     # row stride of the flattened padded grid
    HWp = H * Wp                   # flattened output grid (includes 2 wrap cols/row)
    HW = float(H * W)              # valid elements per channel

    def kernel(x_ref, w_ref, b_ref, gamma_ref, beta_ref, mask_ref, g_ref, *rest):
        if has_scale_shift:
            scale_ref, shift_ref, o_ref = rest
        else:
            (o_ref,) = rest

        # ---- 3x3 conv as 9 accumulating MXU matmuls (no im2col scratch) ----
        # Tap k = ky*3 + kx reads the padded flattened input at static lane offset
        # ky*Wp + kx; contraction is over the padded input channels (Cin_p).
        acc = jnp.dot(w_ref[0], x_ref[0, :, 0:HWp],
                      preferred_element_type=jnp.float32)          # (Cout, HWp) f32
        for k in range(1, 9):                                      # static unroll
            off = (k // 3) * Wp + (k % 3)
            acc = acc + jnp.dot(w_ref[k], x_ref[0, :, off:off + HWp],
                                preferred_element_type=jnp.float32)

        # ---- GroupNorm stats over valid columns only; conv bias folded in scalars --
        m = mask_ref[...]                                  # (1, HWp) 0/1 valid mask
        am = acc * m
        s_c = jnp.sum(am, axis=1, keepdims=True)           # (Cout,1) sum(conv), no bias
        q_c = jnp.sum(am * acc, axis=1, keepdims=True)     # (Cout,1) sum(conv^2)

        b = b_ref[...]                                     # (Cout,1) conv bias
        sum_b = s_c + b * HW                               # sum(conv + b)
        sq_b = q_c + 2.0 * b * s_c + b * b * HW            # sum((conv + b)^2)

        # per-group mean / mean-of-square via precomputed averaging matrix:
        # g_ref[i, j] = 1/(cpg*H*W) if channel j is in channel i's group, else 0.
        g_mean = jnp.dot(g_ref[...], sum_b, preferred_element_type=jnp.float32)
        g_msq = jnp.dot(g_ref[...], sq_b, preferred_element_type=jnp.float32)
        var = jnp.maximum(g_msq - g_mean * g_mean, 0.0)    # clamp: E[x^2]-E[x]^2 >= 0
        rstd = lax.rsqrt(var + 1e-5)                       # (Cout, 1)

        # ---- fold GroupNorm affine + conv bias (+ optional scale/shift) into one
        #      per-channel multiply+add:  y = acc * mult + add
        mult = rstd * gamma_ref[...]                       # (Cout, 1)
        add = (b - g_mean) * mult + beta_ref[...]
        if has_scale_shift:
            s1 = scale_ref[0] + 1.0                        # (Cout, 1)
            mult = mult * s1
            add = add * s1 + shift_ref[0]

        y = acc * mult + add
        y = y * jax.nn.sigmoid(y)                          # SiLU

        # ---- store valid columns only: H static row stores of width W ----
        for h in range(H):                                 # static unroll
            o_ref[0, :, h * W:(h + 1) * W] = \
                y[:, h * Wp:h * Wp + W].astype(o_ref.dtype)

    return kernel


def block_forward(x, weight, bias, gamma, beta, scale_shift=None, groups=8):
    """x: (N, Cin, H, W) float32 NCHW. Returns (N, Cout, H, W) float32."""
    N, Cin, H, W = x.shape
    Cout = weight.shape[0]
    assert Cout % groups == 0
    cpg = Cout // groups
    Wp = W + 2
    HWp = H * Wp
    Lp = (H + 2) * Wp + 2            # flat padded length so every tap slice is in bounds
    Cin_p = _round_up(Cin, 16)       # bf16 sublane-tile alignment

    # ---------- weight standardization (parameter prep, plain JAX, f32) ----------
    # LITERAL port of the module:  (w - mean) / (var + eps).rsqrt()
    eps_w = 1e-5 if x.dtype == jnp.float32 else 1e-3
    w_mean = jnp.mean(weight, axis=(1, 2, 3), keepdims=True)
    w_var = jnp.var(weight, axis=(1, 2, 3), keepdims=True)        # unbiased=False
    w_std = (weight - w_mean) / lax.rsqrt(w_var + eps_w)

    # (Cout, Cin, 3, 3) -> (9, Cout, Cin_p) bf16, tap-major leading axis (k = ky*3+kx)
    w_taps = jnp.transpose(w_std, (2, 3, 0, 1)).reshape(9, Cout, Cin)
    w_taps = jnp.pad(w_taps, ((0, 0), (0, 0), (0, Cin_p - Cin))).astype(jnp.bfloat16)

    # ---------- input prep: one zero-padded, channel-major, flattened bf16 copy ------
    xp = jnp.pad(x, ((0, 0), (0, Cin_p - Cin), (1, 1), (1, 1)))    # (N, Cin_p, H+2, Wp)
    xf = xp.reshape(N, Cin_p, (H + 2) * Wp)
    xf = jnp.pad(xf, ((0, 0), (0, 0), (0, Lp - (H + 2) * Wp)))
    xf = xf.astype(jnp.bfloat16)                                   # halves HBM bytes

    # valid-column mask on the (row-stride Wp) flattened output grid
    mask = (jnp.arange(HWp) % Wp < W).astype(jnp.float32).reshape(1, HWp)

    # group-membership averaging matrix (hoisted out of the kernel; exact int compare)
    ch = jnp.arange(Cout)
    G = ((ch[:, None] // cpg) == (ch[None, :] // cpg)).astype(jnp.float32)
    G = G * (1.0 / float(cpg * H * W))                             # (Cout, Cout)

    bias2 = bias.reshape(Cout, 1).astype(jnp.float32)
    gamma2 = gamma.reshape(Cout, 1).astype(jnp.float32)
    beta2 = beta.reshape(Cout, 1).astype(jnp.float32)

    has_ss = scale_shift is not None

    in_specs = [
        pl.BlockSpec((1, Cin_p, Lp), lambda n: (n, 0, 0)),        # padded input / sample
        pl.BlockSpec((9, Cout, Cin_p), lambda n: (0, 0, 0)),      # per-tap conv weights
        pl.BlockSpec((Cout, 1), lambda n: (0, 0)),                # bias
        pl.BlockSpec((Cout, 1), lambda n: (0, 0)),                # gamma
        pl.BlockSpec((Cout, 1), lambda n: (0, 0)),                # beta
        pl.BlockSpec((1, HWp), lambda n: (0, 0)),                 # valid-column mask
        pl.BlockSpec((Cout, Cout), lambda n: (0, 0)),             # group averaging matrix
    ]
    args = [xf, w_taps, bias2, gamma2, beta2, mask, G]

    if has_ss:
        scale, shift = scale_shift                                # (N, Cout, 1, 1)
        args += [scale.reshape(N, Cout, 1).astype(jnp.float32),
                 shift.reshape(N, Cout, 1).astype(jnp.float32)]
        in_specs += [pl.BlockSpec((1, Cout, 1), lambda n: (n, 0, 0)),
                     pl.BlockSpec((1, Cout, 1), lambda n: (n, 0, 0))]

    out = pl.pallas_call(
        _make_block_kernel(H, W, Cin_p, Cout, has_ss),
        out_shape=jax.ShapeDtypeStruct((N, Cout, H * W), jnp.float32),
        grid_spec=pltpu.PrefetchScalarGridSpec(
            num_scalar_prefetch=0,
            grid=(N,),
            in_specs=in_specs,
            out_specs=pl.BlockSpec((1, Cout, H * W), lambda n: (n, 0, 0)),
            scratch_shapes=[],                                    # no im2col scratch
        ),
        compiler_params=pltpu.CompilerParams(
            dimension_semantics=("parallel",),
            vmem_limit_bytes=48 * 1024 * 1024),                   # fits v7x 64 MiB VMEM
    )(*args)

    # contiguous (N, Cout, H*W) -> NCHW is a free (metadata-only) reshape
    return out.reshape(N, Cout, H, W)


# ---------------- pure-JAX reference (mirrors PyTorch semantics, f32) ----------------
def block_reference(x, weight, bias, gamma, beta, scale_shift=None, groups=8):
    eps_w = 1e-5 if x.dtype == jnp.float32 else 1e-3
    w_mean = jnp.mean(weight, axis=(1, 2, 3), keepdims=True)
    w_var = jnp.var(weight, axis=(1, 2, 3), keepdims=True)
    w_std = (weight - w_mean) / lax.rsqrt(w_var + eps_w)          # literal spec port
    y = lax.conv_general_dilated(
        x, w_std, window_strides=(1, 1), padding=((1, 1), (1, 1)),
        dimension_numbers=("NCHW", "OIHW", "NCHW"))
    y = y + bias[None, :, None, None]
    N, C, H, W = y.shape
    yg = y.reshape(N, groups, C // groups, H, W)
    m = jnp.mean(yg, axis=(2, 3, 4), keepdims=True)
    v = jnp.var(yg, axis=(2, 3, 4), keepdims=True)
    yn = ((yg - m) / jnp.sqrt(v + 1e-5)).reshape(N, C, H, W)
    yn = yn * gamma[None, :, None, None] + beta[None, :, None, None]
    if scale_shift is not None:
        scale, shift = scale_shift
        yn = yn * (scale + 1.0) + shift
    return yn * jax.nn.sigmoid(yn)


if __name__ == "__main__":
    key = jax.random.PRNGKey(0)
    N, dim, dim_out, H, W, groups = 2, 8, 16, 16, 16, 8

    k = jax.random.split(key, 7)
    x = jax.random.normal(k[0], (N, dim, H, W), jnp.float32)
    weight = jax.random.normal(k[1], (dim_out, dim, 3, 3), jnp.float32) * 0.2
    bias = jax.random.normal(k[2], (dim_out,), jnp.float32) * 0.1
    gamma = 1.0 + 0.1 * jax.random.normal(k[3], (dim_out,), jnp.float32)
    beta = 0.1 * jax.random.normal(k[4], (dim_out,), jnp.float32)
    scale = 0.1 * jax.random.normal(k[5], (N, dim_out, 1, 1), jnp.float32)
    shift = 0.1 * jax.random.normal(k[6], (N, dim_out, 1, 1), jnp.float32)

    # scale_shift = None path
    out = block_forward(x, weight, bias, gamma, beta, None, groups)
    jax.block_until_ready(out)
    ref = block_reference(x, weight, bias, gamma, beta, None, groups)
    assert out.shape == (N, dim_out, H, W)
    # bf16 matmul operands with f32 accumulation / f32 epilogue -> ~1e-2 abs error
    assert jnp.allclose(out, ref, atol=3e-2, rtol=3e-2), \
        f"mismatch (None path): {jnp.max(jnp.abs(out - ref))}"

    # scale_shift path
    out_ss = block_forward(x, weight, bias, gamma, beta, (scale, shift), groups)
    jax.block_until_ready(out_ss)
    ref_ss = block_reference(x, weight, bias, gamma, beta, (scale, shift), groups)
    assert jnp.allclose(out_ss, ref_ss, atol=3e-2, rtol=3e-2), \
        f"mismatch (scale_shift path): {jnp.max(jnp.abs(out_ss - ref_ss))}"

    print("KERNEL_OK")
</pallas_src>

<mosaic_0001>
module attributes {stable_mosaic.version = 11 : i64} {
  func.func @kernel(%arg0: i32, %arg1: memref<1x16x326xbf16, #tpu.memory_space<vmem>>, %arg2: memref<9x16x16xbf16, #tpu.memory_space<vmem>>, %arg3: memref<16x1xf32, #tpu.memory_space<vmem>>, %arg4: memref<16x1xf32, #tpu.memory_space<vmem>>, %arg5: memref<16x1xf32, #tpu.memory_space<vmem>>, %arg6: memref<1x288xf32, #tpu.memory_space<vmem>>, %arg7: memref<16x16xf32, #tpu.memory_space<vmem>>, %arg8: memref<1x16x256xf32, #tpu.memory_space<vmem>>) attributes {dimension_semantics = [#tpu.dimension_semantics<parallel>], iteration_bounds = array<i64: 2>, scalar_prefetch = 0 : i64, scratch_operands = 0 : i64, tpu.core_type = #tpu.core_type<tc>, window_params = [{transform_indices = @transform_0, window_bounds = array<i64: 1, 16, 326>}, {pipeline_mode = #tpu.pipeline_mode<synchronous>, transform_indices = @transform_1, window_bounds = array<i64: 9, 16, 16>}, {pipeline_mode = #tpu.pipeline_mode<synchronous>, transform_indices = @transform_2, window_bounds = array<i64: 16, 1>}, {pipeline_mode = #tpu.pipeline_mode<synchronous>, transform_indices = @transform_3, window_bounds = array<i64: 16, 1>}, {pipeline_mode = #tpu.pipeline_mode<synchronous>, transform_indices = @transform_4, window_bounds = array<i64: 16, 1>}, {pipeline_mode = #tpu.pipeline_mode<synchronous>, transform_indices = @transform_5, window_bounds = array<i64: 1, 288>}, {pipeline_mode = #tpu.pipeline_mode<synchronous>, transform_indices = @transform_6, window_bounds = array<i64: 16, 16>}, {transform_indices = @transform_7, window_bounds = array<i64: 1, 16, 256>}]} {
    %c0 = arith.constant 0 : index
    %c0_0 = arith.constant 0 : index
    %c0_1 = arith.constant 0 : index
    %0 = vector.load %arg2[%c0, %c0_0, %c0_1] : memref<9x16x16xbf16, #tpu.memory_space<vmem>>, vector<1x16x16xbf16>
    %1 = vector.shape_cast %0 : vector<1x16x16xbf16> to vector<16x16xbf16>
    %c0_2 = arith.constant 0 : index
    %c0_3 = arith.constant 0 : index
    %c0_4 = arith.constant 0 : index
    %2 = vector.load %arg1[%c0_2, %c0_3, %c0_4] : memref<1x16x326xbf16, #tpu.memory_space<vmem>>, vector<1x16x288xbf16>
    %3 = vector.shape_cast %2 : vector<1x16x288xbf16> to vector<16x288xbf16>
    %cst = arith.constant dense<0.000000e+00> : vector<16x288xf32>
    %4 = tpu.matmul %1, %3, %cst {dimension_numbers = #tpu.dot_dimension_numbers<[1], [0], [0], [1], [0, 0, 1, 1], [], []>} : vector<16x16xbf16>, vector<16x288xbf16>, vector<16x288xf32> -> vector<16x288xf32>
    %c1 = arith.constant 1 : index
    %c0_5 = arith.constant 0 : index
    %c0_6 = arith.constant 0 : index
    %5 = vector.load %arg2[%c1, %c0_5, %c0_6] : memref<9x16x16xbf16, #tpu.memory_space<vmem>>, vector<1x16x16xbf16>
    %6 = vector.shape_cast %5 : vector<1x16x16xbf16> to vector<16x16xbf16>
    %c0_7 = arith.constant 0 : index
    %c0_8 = arith.constant 0 : index
    %c1_9 = arith.constant 1 : index
    %7 = vector.load %arg1[%c0_7, %c0_8, %c1_9] : memref<1x16x326xbf16, #tpu.memory_space<vmem>>, vector<1x16x288xbf16>
    %8 = vector.shape_cast %7 : vector<1x16x288xbf16> to vector<16x288xbf16>
    %cst_10 = arith.constant dense<0.000000e+00> : vector<16x288xf32>
    %9 = tpu.matmul %6, %8, %cst_10 {dimension_numbers = #tpu.dot_dimension_numbers<[1], [0], [0], [1], [0, 0, 1, 1], [], []>} : vector<16x16xbf16>, vector<16x288xbf16>, vector<16x288xf32> -> vector<16x288xf32>
    %10 = arith.addf %4, %9 : vector<16x288xf32>
    %c2 = arith.constant 2 : index
    %c0_11 = arith.constant 0 : index
    %c0_12 = arith.constant 0 : index
    %11 = vector.load %arg2[%c2, %c0_11, %c0_12] : memref<9x16x16xbf16, #tpu.memory_space<vmem>>, vector<1x16x16xbf16>
    %12 = vector.shape_cast %11 : vector<1x16x16xbf16> to vector<16x16xbf16>
    %c0_13 = arith.constant 0 : index
    %c0_14 = arith.constant 0 : index
    %c2_15 = arith.constant 2 : index
    %13 = vector.load %arg1[%c0_13, %c0_14, %c2_15] : memref<1x16x326xbf16, #tpu.memory_space<vmem>>, vector<1x16x288xbf16>
    %14 = vector.shape_cast %13 : vector<1x16x288xbf16> to vector<16x288xbf16>
    %cst_16 = arith.constant dense<0.000000e+00> : vector<16x288xf32>
    %15 = tpu.matmul %12, %14, %cst_16 {dimension_numbers = #tpu.dot_dimension_numbers<[1], [0], [0], [1], [0, 0, 1, 1], [], []>} : vector<16x16xbf16>, vector<16x288xbf16>, vector<16x288xf32> -> vector<16x288xf32>
    %16 = arith.addf %10, %15 : vector<16x288xf32>
    %c3 = arith.constant 3 : index
    %c0_17 = arith.constant 0 : index
    %c0_18 = arith.constant 0 : index
    %17 = vector.load %arg2[%c3, %c0_17, %c0_18] : memref<9x16x16xbf16, #tpu.memory_space<vmem>>, vector<1x16x16xbf16>
    %18 = vector.shape_cast %17 : vector<1x16x16xbf16> to vector<16x16xbf16>
    %c0_19 = arith.constant 0 : index
    %c0_20 = arith.constant 0 : index
    %c18 = arith.constant 18 : index
    %19 = vector.load %arg1[%c0_19, %c0_20, %c18] : memref<1x16x326xbf16, #tpu.memory_space<vmem>>, vector<1x16x288xbf16>
    %20 = vector.shape_cast %19 : vector<1x16x288xbf16> to vector<16x288xbf16>
    %cst_21 = arith.constant dense<0.000000e+00> : vector<16x288xf32>
    %21 = tpu.matmul %18, %20, %cst_21 {dimension_numbers = #tpu.dot_dimension_numbers<[1], [0], [0], [1], [0, 0, 1, 1], [], []>} : vector<16x16xbf16>, vector<16x288xbf16>, vector<16x288xf32> -> vector<16x288xf32>
    %22 = arith.addf %16, %21 : vector<16x288xf32>
    %c4 = arith.constant 4 : index
    %c0_22 = arith.constant 0 : index
    %c0_23 = arith.constant 0 : index
    %23 = vector.load %arg2[%c4, %c0_22, %c0_23] : memref<9x16x16xbf16, #tpu.memory_space<vmem>>, vector<1x16x16xbf16>
    %24 = vector.shape_cast %23 : vector<1x16x16xbf16> to vector<16x16xbf16>
    %c0_24 = arith.constant 0 : index
    %c0_25 = arith.constant 0 : index
    %c19 = arith.constant 19 : index
    %25 = vector.load %arg1[%c0_24, %c0_25, %c19] : memref<1x16x326xbf16, #tpu.memory_space<vmem>>, vector<1x16x288xbf16>
    %26 = vector.shape_cast %25 : vector<1x16x288xbf16> to vector<16x288xbf16>
    %cst_26 = arith.constant dense<0.000000e+00> : vector<16x288xf32>
    %27 = tpu.matmul %24, %26, %cst_26 {dimension_numbers = #tpu.dot_dimension_numbers<[1], [0], [0], [1], [0, 0, 1, 1], [], []>} : vector<16x16xbf16>, vector<16x288xbf16>, vector<16x288xf32> -> vector<16x288xf32>
    %28 = arith.addf %22, %27 : vector<16x288xf32>
    %c5 = arith.constant 5 : index
    %c0_27 = arith.constant 0 : index
    %c0_28 = arith.constant 0 : index
    %29 = vector.load %arg2[%c5, %c0_27, %c0_28] : memref<9x16x16xbf16, #tpu.memory_space<vmem>>, vector<1x16x16xbf16>
    %30 = vector.shape_cast %29 : vector<1x16x16xbf16> to vector<16x16xbf16>
    %c0_29 = arith.constant 0 : index
    %c0_30 = arith.constant 0 : index
    %c20 = arith.constant 20 : index
    %31 = vector.load %arg1[%c0_29, %c0_30, %c20] : memref<1x16x326xbf16, #tpu.memory_space<vmem>>, vector<1x16x288xbf16>
    %32 = vector.shape_cast %31 : vector<1x16x288xbf16> to vector<16x288xbf16>
    %cst_31 = arith.constant dense<0.000000e+00> : vector<16x288xf32>
    %33 = tpu.matmul %30, %32, %cst_31 {dimension_numbers = #tpu.dot_dimension_numbers<[1], [0], [0], [1], [0, 0, 1, 1], [], []>} : vector<16x16xbf16>, vector<16x288xbf16>, vector<16x288xf32> -> vector<16x288xf32>
    %34 = arith.addf %28, %33 : vector<16x288xf32>
    %c6 = arith.constant 6 : index
    %c0_32 = arith.constant 0 : index
    %c0_33 = arith.constant 0 : index
    %35 = vector.load %arg2[%c6, %c0_32, %c0_33] : memref<9x16x16xbf16, #tpu.memory_space<vmem>>, vector<1x16x16xbf16>
    %36 = vector.shape_cast %35 : vector<1x16x16xbf16> to vector<16x16xbf16>
    %c0_34 = arith.constant 0 : index
    %c0_35 = arith.constant 0 : index
    %c36 = arith.constant 36 : index
    %37 = vector.load %arg1[%c0_34, %c0_35, %c36] : memref<1x16x326xbf16, #tpu.memory_space<vmem>>, vector<1x16x288xbf16>
    %38 = vector.shape_cast %37 : vector<1x16x288xbf16> to vector<16x288xbf16>
    %cst_36 = arith.constant dense<0.000000e+00> : vector<16x288xf32>
    %39 = tpu.matmul %36, %38, %cst_36 {dimension_numbers = #tpu.dot_dimension_numbers<[1], [0], [0], [1], [0, 0, 1, 1], [], []>} : vector<16x16xbf16>, vector<16x288xbf16>, vector<16x288xf32> -> vector<16x288xf32>
    %40 = arith.addf %34, %39 : vector<16x288xf32>
    %c7 = arith.constant 7 : index
    %c0_37 = arith.constant 0 : index
    %c0_38 = arith.constant 0 : index
    %41 = vector.load %arg2[%c7, %c0_37, %c0_38] : memref<9x16x16xbf16, #tpu.memory_space<vmem>>, vector<1x16x16xbf16>
    %42 = vector.shape_cast %41 : vector<1x16x16xbf16> to vector<16x16xbf16>
    %c0_39 = arith.constant 0 : index
    %c0_40 = arith.constant 0 : index
    %c37 = arith.constant 37 : index
    %43 = vector.load %arg1[%c0_39, %c0_40, %c37] : memref<1x16x326xbf16, #tpu.memory_space<vmem>>, vector<1x16x288xbf16>
    %44 = vector.shape_cast %43 : vector<1x16x288xbf16> to vector<16x288xbf16>
    %cst_41 = arith.constant dense<0.000000e+00> : vector<16x288xf32>
    %45 = tpu.matmul %42, %44, %cst_41 {dimension_numbers = #tpu.dot_dimension_numbers<[1], [0], [0], [1], [0, 0, 1, 1], [], []>} : vector<16x16xbf16>, vector<16x288xbf16>, vector<16x288xf32> -> vector<16x288xf32>
    %46 = arith.addf %40, %45 : vector<16x288xf32>
    %c8 = arith.constant 8 : index
    %c0_42 = arith.constant 0 : index
    %c0_43 = arith.constant 0 : index
    %47 = vector.load %arg2[%c8, %c0_42, %c0_43] : memref<9x16x16xbf16, #tpu.memory_space<vmem>>, vector<1x16x16xbf16>
    %48 = vector.shape_cast %47 : vector<1x16x16xbf16> to vector<16x16xbf16>
    %c0_44 = arith.constant 0 : index
    %c0_45 = arith.constant 0 : index
    %c38 = arith.constant 38 : index
    %49 = vector.load %arg1[%c0_44, %c0_45, %c38] : memref<1x16x326xbf16, #tpu.memory_space<vmem>>, vector<1x16x288xbf16>
    %50 = vector.shape_cast %49 : vector<1x16x288xbf16> to vector<16x288xbf16>
    %cst_46 = arith.constant dense<0.000000e+00> : vector<16x288xf32>
    %51 = tpu.matmul %48, %50, %cst_46 {dimension_numbers = #tpu.dot_dimension_numbers<[1], [0], [0], [1], [0, 0, 1, 1], [], []>} : vector<16x16xbf16>, vector<16x288xbf16>, vector<16x288xf32> -> vector<16x288xf32>
    %52 = arith.addf %46, %51 : vector<16x288xf32>
    %c0_47 = arith.constant 0 : index
    %c0_48 = arith.constant 0 : index
    %53 = vector.load %arg6[%c0_47, %c0_48] : memref<1x288xf32, #tpu.memory_space<vmem>>, vector<1x288xf32>
    %54 = vector.broadcast %53 : vector<1x288xf32> to vector<16x288xf32>
    %55 = arith.mulf %52, %54 : vector<16x288xf32>
    %cst_49 = arith.constant dense<0.000000e+00> : vector<16xf32>
    %56 = vector.multi_reduction <add>, %55, %cst_49 [1] : vector<16x288xf32> to vector<16xf32>
    %57 = vector.shape_cast %56 : vector<16xf32> to vector<16x1xf32>
    %58 = arith.mulf %55, %52 : vector<16x288xf32>
    %cst_50 = arith.constant dense<0.000000e+00> : vector<16xf32>
    %59 = vector.multi_reduction <add>, %58, %cst_50 [1] : vector<16x288xf32> to vector<16xf32>
    %60 = vector.shape_cast %59 : vector<16xf32> to vector<16x1xf32>
    %c0_51 = arith.constant 0 : index
    %c0_52 = arith.constant 0 : index
    %61 = vector.load %arg3[%c0_51, %c0_52] : memref<16x1xf32, #tpu.memory_space<vmem>>, vector<16x1xf32>
    %cst_53 = arith.constant 2.560000e+02 : f32
    %62 = vector.broadcast %cst_53 : f32 to vector<16x1xf32>
    %63 = arith.mulf %61, %62 : vector<16x1xf32>
    %64 = arith.addf %57, %63 : vector<16x1xf32>
    %cst_54 = arith.constant 2.000000e+00 : f32
    %65 = vector.broadcast %cst_54 : f32 to vector<16x1xf32>
    %66 = arith.mulf %65, %61 : vector<16x1xf32>
    %67 = arith.mulf %66, %57 : vector<16x1xf32>
    %68 = arith.addf %60, %67 : vector<16x1xf32>
    %69 = arith.mulf %61, %61 : vector<16x1xf32>
    %cst_55 = arith.constant 2.560000e+02 : f32
    %70 = vector.broadcast %cst_55 : f32 to vector<16x1xf32>
    %71 = arith.mulf %69, %70 : vector<16x1xf32>
    %72 = arith.addf %68, %71 : vector<16x1xf32>
    %c0_56 = arith.constant 0 : index
    %c0_57 = arith.constant 0 : index
    %73 = vector.load %arg7[%c0_56, %c0_57] : memref<16x16xf32, #tpu.memory_space<vmem>>, vector<16x16xf32>
    %cst_58 = arith.constant dense<0.000000e+00> : vector<16x1xf32>
    %74 = tpu.matmul %73, %64, %cst_58 {dimension_numbers = #tpu.dot_dimension_numbers<[1], [0], [0], [1], [0, 0, 1, 1], [], []>} : vector<16x16xf32>, vector<16x1xf32>, vector<16x1xf32> -> vector<16x1xf32>
    %c0_59 = arith.constant 0 : index
    %c0_60 = arith.constant 0 : index
    %75 = vector.load %arg7[%c0_59, %c0_60] : memref<16x16xf32, #tpu.memory_space<vmem>>, vector<16x16xf32>
    %cst_61 = arith.constant dense<0.000000e+00> : vector<16x1xf32>
    %76 = tpu.matmul %75, %72, %cst_61 {dimension_numbers = #tpu.dot_dimension_numbers<[1], [0], [0], [1], [0, 0, 1, 1], [], []>} : vector<16x16xf32>, vector<16x1xf32>, vector<16x1xf32> -> vector<16x1xf32>
    %77 = arith.mulf %74, %74 : vector<16x1xf32>
    %78 = arith.subf %76, %77 : vector<16x1xf32>
    %cst_62 = arith.constant 0.000000e+00 : f32
    %79 = vector.broadcast %cst_62 : f32 to vector<16x1xf32>
    %80 = arith.maximumf %78, %79 : vector<16x1xf32>
    %cst_63 = arith.constant 9.99999974E-6 : f32
    %81 = vector.broadcast %cst_63 : f32 to vector<16x1xf32>
    %82 = arith.addf %80, %81 : vector<16x1xf32>
    %83 = math.rsqrt %82 : vector<16x1xf32>
    %c0_64 = arith.constant 0 : index
    %c0_65 = arith.constant 0 : index
    %84 = vector.load %arg4[%c0_64, %c0_65] : memref<16x1xf32, #tpu.memory_space<vmem>>, vector<16x1xf32>
    %85 = arith.mulf %83, %84 : vector<16x1xf32>
    %86 = arith.subf %61, %74 : vector<16x1xf32>
    %87 = arith.mulf %86, %85 : vector<16x1xf32>
    %c0_66 = arith.constant 0 : index
    %c0_67 = arith.constant 0 : index
    %88 = vector.load %arg5[%c0_66, %c0_67] : memref<16x1xf32, #tpu.memory_space<vmem>>, vector<16x1xf32>
    %89 = arith.addf %87, %88 : vector<16x1xf32>
    %90 = vector.broadcast %85 : vector<16x1xf32> to vector<16x288xf32>
    %91 = arith.mulf %52, %90 : vector<16x288xf32>
    %92 = vector.broadcast %89 : vector<16x1xf32> to vector<16x288xf32>
    %93 = arith.addf %91, %92 : vector<16x288xf32>
    %94 = arith.negf %93 : vector<16x288xf32>
    %95 = math.exp %94 : vector<16x288xf32>
    %cst_68 = arith.constant 1.000000e+00 : f32
    %96 = vector.broadcast %cst_68 : f32 to vector<16x288xf32>
    %97 = arith.addf %96, %95 : vector<16x288xf32>
    %98 = arith.divf %96, %97 : vector<16x288xf32>
    %99 = arith.mulf %93, %98 : vector<16x288xf32>
    %100 = vector.extract_strided_slice %99 {offsets = [0, 0], sizes = [16, 16], strides = [1, 1]} : vector<16x288xf32> to vector<16x16xf32>
    %c0_69 = arith.constant 0 : index
    %c0_70 = arith.constant 0 : index
    %c0_71 = arith.constant 0 : index
    %101 = vector.load %arg8[%c0_69, %c0_70, %c0_71] : memref<1x16x256xf32, #tpu.memory_space<vmem>>, vector<1x16x16xf32>
    %102 = vector.shape_cast %101 : vector<1x16x16xf32> to vector<16x16xf32>
    %103 = vector.shape_cast %100 : vector<16x16xf32> to vector<1x16x16xf32>
    tpu.vector_store %arg8[%c0_69, %c0_70, %c0_71], %103 {strides = array<i32>} : memref<1x16x256xf32, #tpu.memory_space<vmem>>, vector<1x16x16xf32>,
    %104 = vector.extract_strided_slice %99 {offsets = [0, 18], sizes = [16, 16], strides = [1, 1]} : vector<16x288xf32> to vector<16x16xf32>
    %c0_72 = arith.constant 0 : index
    %c0_73 = arith.constant 0 : index
    %c16 = arith.constant 16 : index
    %105 = vector.load %arg8[%c0_72, %c0_73, %c16] : memref<1x16x256xf32, #tpu.memory_space<vmem>>, vector<1x16x16xf32>
    %106 = vector.shape_cast %105 : vector<1x16x16xf32> to vector<16x16xf32>
    %107 = vector.shape_cast %104 : vector<16x16xf32> to vector<1x16x16xf32>
    tpu.vector_store %arg8[%c0_72, %c0_73, %c16], %107 {strides = array<i32>} : memref<1x16x256xf32, #tpu.memory_space<vmem>>, vector<1x16x16xf32>,
    %108 = vector.extract_strided_slice %99 {offsets = [0, 36], sizes = [16, 16], strides = [1, 1]} : vector<16x288xf32> to vector<16x16xf32>
    %c0_74 = arith.constant 0 : index
    %c0_75 = arith.constant 0 : index
    %c32 = arith.constant 32 : index
    %109 = vector.load %arg8[%c0_74, %c0_75, %c32] : memref<1x16x256xf32, #tpu.memory_space<vmem>>, vector<1x16x16xf32>
    %110 = vector.shape_cast %109 : vector<1x16x16xf32> to vector<16x16xf32>
    %111 = vector.shape_cast %108 : vector<16x16xf32> to vector<1x16x16xf32>
    tpu.vector_store %arg8[%c0_74, %c0_75, %c32], %111 {strides = array<i32>} : memref<1x16x256xf32, #tpu.memory_space<vmem>>, vector<1x16x16xf32>,
    %112 = vector.extract_strided_slice %99 {offsets = [0, 54], sizes = [16, 16], strides = [1, 1]} : vector<16x288xf32> to vector<16x16xf32>
    %c0_76 = arith.constant 0 : index
    %c0_77 = arith.constant 0 : index
    %c48 = arith.constant 48 : index
    %113 = vector.load %arg8[%c0_76, %c0_77, %c48] : memref<1x16x256xf32, #tpu.memory_space<vmem>>, vector<1x16x16xf32>
    %114 = vector.shape_cast %113 : vector<1x16x16xf32> to vector<16x16xf32>
    %115 = vector.shape_cast %112 : vector<16x16xf32> to vector<1x16x16xf32>
    tpu.vector_store %arg8[%c0_76, %c0_77, %c48], %115 {strides = array<i32>} : memref<1x16x256xf32, #tpu.memory_space<vmem>>, vector<1x16x16xf32>,
    %116 = vector.extract_strided_slice %99 {offsets = [0, 72], sizes = [16, 16], strides = [1, 1]} : vector<16x288xf32> to vector<16x16xf32>
    %c0_78 = arith.constant 0 : index
    %c0_79 = arith.constant 0 : index
    %c64 = arith.constant 64 : index
    %117 = vector.load %arg8[%c0_78, %c0_79, %c64] : memref<1x16x256xf32, #tpu.memory_space<vmem>>, vector<1x16x16xf32>
    %118 = vector.shape_cast %117 : vector<1x16x16xf32> to vector<16x16xf32>
    %119 = vector.shape_cast %116 : vector<16x16xf32> to vector<1x16x16xf32>
    tpu.vector_store %arg8[%c0_78, %c0_79, %c64], %119 {strides = array<i32>} : memref<1x16x256xf32, #tpu.memory_space<vmem>>, vector<1x16x16xf32>,
    %120 = vector.extract_strided_slice %99 {offsets = [0, 90], sizes = [16, 16], strides = [1, 1]} : vector<16x288xf32> to vector<16x16xf32>
    %c0_80 = arith.constant 0 : index
    %c0_81 = arith.constant 0 : index
    %c80 = arith.constant 80 : index
    %121 = vector.load %arg8[%c0_80, %c0_81, %c80] : memref<1x16x256xf32, #tpu.memory_space<vmem>>, vector<1x16x16xf32>
    %122 = vector.shape_cast %121 : vector<1x16x16xf32> to vector<16x16xf32>
    %123 = vector.shape_cast %120 : vector<16x16xf32> to vector<1x16x16xf32>
    tpu.vector_store %arg8[%c0_80, %c0_81, %c80], %123 {strides = array<i32>} : memref<1x16x256xf32, #tpu.memory_space<vmem>>, vector<1x16x16xf32>,
    %124 = vector.extract_strided_slice %99 {offsets = [0, 108], sizes = [16, 16], strides = [1, 1]} : vector<16x288xf32> to vector<16x16xf32>
    %c0_82 = arith.constant 0 : index
    %c0_83 = arith.constant 0 : index
    %c96 = arith.constant 96 : index
    %125 = vector.load %arg8[%c0_82, %c0_83, %c96] : memref<1x16x256xf32, #tpu.memory_space<vmem>>, vector<1x16x16xf32>
    %126 = vector.shape_cast %125 : vector<1x16x16xf32> to vector<16x16xf32>
    %127 = vector.shape_cast %124 : vector<16x16xf32> to vector<1x16x16xf32>
    tpu.vector_store %arg8[%c0_82, %c0_83, %c96], %127 {strides = array<i32>} : memref<1x16x256xf32, #tpu.memory_space<vmem>>, vector<1x16x16xf32>,
    %128 = vector.extract_strided_slice %99 {offsets = [0, 126], sizes = [16, 16], strides = [1, 1]} : vector<16x288xf32> to vector<16x16xf32>
    %c0_84 = arith.constant 0 : index
    %c0_85 = arith.constant 0 : index
    %c112 = arith.constant 112 : index
    %129 = vector.load %arg8[%c0_84, %c0_85, %c112] : memref<1x16x256xf32, #tpu.memory_space<vmem>>, vector<1x16x16xf32>
    %130 = vector.shape_cast %129 : vector<1x16x16xf32> to vector<16x16xf32>
    %131 = vector.shape_cast %128 : vector<16x16xf32> to vector<1x16x16xf32>
    tpu.vector_store %arg8[%c0_84, %c0_85, %c112], %131 {strides = array<i32>} : memref<1x16x256xf32, #tpu.memory_space<vmem>>, vector<1x16x16xf32>,
    %132 = vector.extract_strided_slice %99 {offsets = [0, 144], sizes = [16, 16], strides = [1, 1]} : vector<16x288xf32> to vector<16x16xf32>
    %c0_86 = arith.constant 0 : index
    %c0_87 = arith.constant 0 : index
    %c128 = arith.constant 128 : index
    %133 = vector.load %arg8[%c0_86, %c0_87, %c128] : memref<1x16x256xf32, #tpu.memory_space<vmem>>, vector<1x16x16xf32>
    %134 = vector.shape_cast %133 : vector<1x16x16xf32> to vector<16x16xf32>
    %135 = vector.shape_cast %132 : vector<16x16xf32> to vector<1x16x16xf32>
    tpu.vector_store %arg8[%c0_86, %c0_87, %c128], %135 {strides = array<i32>} : memref<1x16x256xf32, #tpu.memory_space<vmem>>, vector<1x16x16xf32>,
    %136 = vector.extract_strided_slice %99 {offsets = [0, 162], sizes = [16, 16], strides = [1, 1]} : vector<16x288xf32> to vector<16x16xf32>
    %c0_88 = arith.constant 0 : index
    %c0_89 = arith.constant 0 : index
    %c144 = arith.constant 144 : index
    %137 = vector.load %arg8[%c0_88, %c0_89, %c144] : memref<1x16x256xf32, #tpu.memory_space<vmem>>, vector<1x16x16xf32>
    %138 = vector.shape_cast %137 : vector<1x16x16xf32> to vector<16x16xf32>
    %139 = vector.shape_cast %136 : vector<16x16xf32> to vector<1x16x16xf32>
    tpu.vector_store %arg8[%c0_88, %c0_89, %c144], %139 {strides = array<i32>} : memref<1x16x256xf32, #tpu.memory_space<vmem>>, vector<1x16x16xf32>,
    %140 = vector.extract_strided_slice %99 {offsets = [0, 180], sizes = [16, 16], strides = [1, 1]} : vector<16x288xf32> to vector<16x16xf32>
    %c0_90 = arith.constant 0 : index
    %c0_91 = arith.constant 0 : index
    %c160 = arith.constant 160 : index
    %141 = vector.load %arg8[%c0_90, %c0_91, %c160] : memref<1x16x256xf32, #tpu.memory_space<vmem>>, vector<1x16x16xf32>
    %142 = vector.shape_cast %141 : vector<1x16x16xf32> to vector<16x16xf32>
    %143 = vector.shape_cast %140 : vector<16x16xf32> to vector<1x16x16xf32>
    tpu.vector_store %arg8[%c0_90, %c0_91, %c160], %143 {strides = array<i32>} : memref<1x16x256xf32, #tpu.memory_space<vmem>>, vector<1x16x16xf32>,
    %144 = vector.extract_strided_slice %99 {offsets = [0, 198], sizes = [16, 16], strides = [1, 1]} : vector<16x288xf32> to vector<16x16xf32>
    %c0_92 = arith.constant 0 : index
    %c0_93 = arith.constant 0 : index
    %c176 = arith.constant 176 : index
    %145 = vector.load %arg8[%c0_92, %c0_93, %c176] : memref<1x16x256xf32, #tpu.memory_space<vmem>>, vector<1x16x16xf32>
    %146 = vector.shape_cast %145 : vector<1x16x16xf32> to vector<16x16xf32>
    %147 = vector.shape_cast %144 : vector<16x16xf32> to vector<1x16x16xf32>
    tpu.vector_store %arg8[%c0_92, %c0_93, %c176], %147 {strides = array<i32>} : memref<1x16x256xf32, #tpu.memory_space<vmem>>, vector<1x16x16xf32>,
    %148 = vector.extract_strided_slice %99 {offsets = [0, 216], sizes = [16, 16], strides = [1, 1]} : vector<16x288xf32> to vector<16x16xf32>
    %c0_94 = arith.constant 0 : index
    %c0_95 = arith.constant 0 : index
    %c192 = arith.constant 192 : index
    %149 = vector.load %arg8[%c0_94, %c0_95, %c192] : memref<1x16x256xf32, #tpu.memory_space<vmem>>, vector<1x16x16xf32>
    %150 = vector.shape_cast %149 : vector<1x16x16xf32> to vector<16x16xf32>
    %151 = vector.shape_cast %148 : vector<16x16xf32> to vector<1x16x16xf32>
    tpu.vector_store %arg8[%c0_94, %c0_95, %c192], %151 {strides = array<i32>} : memref<1x16x256xf32, #tpu.memory_space<vmem>>, vector<1x16x16xf32>,
    %152 = vector.extract_strided_slice %99 {offsets = [0, 234], sizes = [16, 16], strides = [1, 1]} : vector<16x288xf32> to vector<16x16xf32>
    %c0_96 = arith.constant 0 : index
    %c0_97 = arith.constant 0 : index
    %c208 = arith.constant 208 : index
    %153 = vector.load %arg8[%c0_96, %c0_97, %c208] : memref<1x16x256xf32, #tpu.memory_space<vmem>>, vector<1x16x16xf32>
    %154 = vector.shape_cast %153 : vector<1x16x16xf32> to vector<16x16xf32>
    %155 = vector.shape_cast %152 : vector<16x16xf32> to vector<1x16x16xf32>
    tpu.vector_store %arg8[%c0_96, %c0_97, %c208], %155 {strides = array<i32>} : memref<1x16x256xf32, #tpu.memory_space<vmem>>, vector<1x16x16xf32>,
    %156 = vector.extract_strided_slice %99 {offsets = [0, 252], sizes = [16, 16], strides = [1, 1]} : vector<16x288xf32> to vector<16x16xf32>
    %c0_98 = arith.constant 0 : index
    %c0_99 = arith.constant 0 : index
    %c224 = arith.constant 224 : index
    %157 = vector.load %arg8[%c0_98, %c0_99, %c224] : memref<1x16x256xf32, #tpu.memory_space<vmem>>, vector<1x16x16xf32>
    %158 = vector.shape_cast %157 : vector<1x16x16xf32> to vector<16x16xf32>
    %159 = vector.shape_cast %156 : vector<16x16xf32> to vector<1x16x16xf32>
    tpu.vector_store %arg8[%c0_98, %c0_99, %c224], %159 {strides = array<i32>} : memref<1x16x256xf32, #tpu.memory_space<vmem>>, vector<1x16x16xf32>,
    %160 = vector.extract_strided_slice %99 {offsets = [0, 270], sizes = [16, 16], strides = [1, 1]} : vector<16x288xf32> to vector<16x16xf32>
    %c0_100 = arith.constant 0 : index
    %c0_101 = arith.constant 0 : index
    %c240 = arith.constant 240 : index
    %161 = vector.load %arg8[%c0_100, %c0_101, %c240] : memref<1x16x256xf32, #tpu.memory_space<vmem>>, vector<1x16x16xf32>
    %162 = vector.shape_cast %161 : vector<1x16x16xf32> to vector<16x16xf32>
    %163 = vector.shape_cast %160 : vector<16x16xf32> to vector<1x16x16xf32>
    tpu.vector_store %arg8[%c0_100, %c0_101, %c240], %163 {strides = array<i32>} : memref<1x16x256xf32, #tpu.memory_space<vmem>>, vector<1x16x16xf32>,
    return
  }
  func.func @transform_0(%arg0: i32) -> (i32, i32, i32) {
    %c0_i32 = arith.constant 0 : i32
    %c0_i32_0 = arith.constant 0 : i32
    %c0_i32_1 = arith.constant 0 : i32
    return %arg0, %c0_i32, %c0_i32_0 : i32, i32, i32
  }
  func.func @transform_1(%arg0: i32) -> (i32, i32, i32) {
    %c0_i32 = arith.constant 0 : i32
    %c0_i32_0 = arith.constant 0 : i32
    %c0_i32_1 = arith.constant 0 : i32
    %c0_i32_2 = arith.constant 0 : i32
    return %c0_i32, %c0_i32_0, %c0_i32_1 : i32, i32, i32
  }
  func.func @transform_2(%arg0: i32) -> (i32, i32) {
    %c0_i32 = arith.constant 0 : i32
    %c0_i32_0 = arith.constant 0 : i32
    %c0_i32_1 = arith.constant 0 : i32
    return %c0_i32, %c0_i32_0 : i32, i32
  }
  func.func @transform_3(%arg0: i32) -> (i32, i32) {
    %c0_i32 = arith.constant 0 : i32
    %c0_i32_0 = arith.constant 0 : i32
    %c0_i32_1 = arith.constant 0 : i32
    return %c0_i32, %c0_i32_0 : i32, i32
  }
  func.func @transform_4(%arg0: i32) -> (i32, i32) {
    %c0_i32 = arith.constant 0 : i32
    %c0_i32_0 = arith.constant 0 : i32
    %c0_i32_1 = arith.constant 0 : i32
    return %c0_i32, %c0_i32_0 : i32, i32
  }
  func.func @transform_5(%arg0: i32) -> (i32, i32) {
    %c0_i32 = arith.constant 0 : i32
    %c0_i32_0 = arith.constant 0 : i32
    %c0_i32_1 = arith.constant 0 : i32
    return %c0_i32, %c0_i32_0 : i32, i32
  }
  func.func @transform_6(%arg0: i32) -> (i32, i32) {
    %c0_i32 = arith.constant 0 : i32
    %c0_i32_0 = arith.constant 0 : i32
    %c0_i32_1 = arith.constant 0 : i32
    return %c0_i32, %c0_i32_0 : i32, i32
  }
  func.func @transform_7(%arg0: i32) -> (i32, i32, i32) {
    %c0_i32 = arith.constant 0 : i32
    %c0_i32_0 = arith.constant 0 : i32
    %c0_i32_1 = arith.constant 0 : i32
    return %arg0, %c0_i32, %c0_i32_0 : i32, i32, i32
  }
}

</mosaic_0001>

<llo_original>
// kernel: tpu_custom_call.1
$region0: #{tpu_custom_call.1}
  #allocation0 [shape = 'u32[]', space=smem, size = 0x4, offset = 0x4, fixed_abs, tag = 'smem constant byte address 0x4 - core index']
  #allocation1 [shape = 'u32[72,128]{1,0:T(1,128)}', space=vmem, size = 0x9000, scoped, tag = 'internal scratch']
  %s0 = inlined_call_operand.hbm [shape: bf16[2,16,326], index: 0, kind: input, shape index: {}]
  %s1 = inlined_call_operand.hbm [shape: bf16[9,16,16], index: 1, kind: input, shape index: {}]
  %s2 = inlined_call_operand.vmem [shape: f32[16,1], index: 2, kind: input, shape index: {}]
  %s3 = inlined_call_operand.vmem [shape: f32[16,1], index: 3, kind: input, shape index: {}]
  %s4 = inlined_call_operand.vmem [shape: f32[16,1], index: 4, kind: input, shape index: {}]
  %s5 = inlined_call_operand.vmem [shape: f32[1,288], index: 5, kind: input, shape index: {}]
  %s6 = inlined_call_operand.vmem [shape: f32[16,16], index: 6, kind: input, shape index: {}]
  %s7 = inlined_call_operand.hbm [shape: f32[2,16,256], index: 7, kind: output, shape index: {}]
  %s8 = sld [smem:[#allocation0]]
  $region69: #{tpu_custom_call.1} parent=0
    _
  %s10 = ssub.s32 1, %s8
  %s11 = scalar_select 0, %s10, %s8
  $region1: #{tpu_custom_call.1} parent=0
    #allocation2 [shape = 'u8[24576]{0}', space=vmem, size = 0x6000, scoped, tag = 'input window, operand 0']
    #allocation3 [shape = 's32[2]{0}', space=sflag, size = 0x8, scoped, tag = 'scoped memory for tpu_custom_call.1']
    #allocation4 [shape = 's32[2]{0}', space=sflag, size = 0x8, scoped, tag = 'scoped memory for tpu_custom_call.1']
    #allocation5 [shape = 'u8[36864]{0}', space=vmem, size = 0x9000, scoped, tag = 'input window, operand 1, single buffered']
    #allocation6 [shape = 's32[1]{0}', space=sflag, size = 0x4, scoped, tag = 'scoped memory for tpu_custom_call.1']
    #allocation7 [shape = 'u8[32768]{0}', space=vmem, size = 0x8000, scoped, tag = 'output window, operand 0']
    %12 = vsyncpa [#allocation3], 0
    %s13 = scalar_lea.sflag [#allocation3], 1
    %14 = vsyncpa %s13, 0
    %15 = vsyncpa [#allocation6], 0
    %16 = vsyncpa [#allocation4], 0
    %s17 = scalar_lea.sflag [#allocation4], 1
    %18 = vsyncpa %s17, 0
    loop: start=0, step=1, limit=4
    $region2: #{tpu_custom_call.1} parent=1 // loop_pre_header
      _
    $region3: #{tpu_custom_call.1} parent=1 // loop_header
      %s20 = sphi 0, %s24
      %p21 = scmp.ge.s32.totalorder %s20, 4
      %s30 = sphi 0, %s32
      %s33 = sphi 0, %s30
      %s34 = sphi 0, %s33
      %s50 = sphi 0, %s34
      %s54 = sphi 0, %s54
      %s56 = sphi 0, %s54
      %s57 = sphi 0, %s56
      %s71 = sphi 0, %s57
      %s75 = sphi 0, %s75
      %s77 = sphi 0, %s75
      %s78 = sphi 0, %s77
      %s92 = sphi 0, %s78
      %s96 = sphi 0, %s96
      %s98 = sphi 0, %s96
      %s99 = sphi 0, %s98
      %s113 = sphi 0, %s99
      %s117 = sphi 0, %s117
      %s119 = sphi 0, %s117
      %s120 = sphi 0, %s119
      %s134 = sphi 0, %s120
      %s138 = sphi 0, %s138
      %s140 = sphi 0, %s138
      %s141 = sphi 0, %s140
      %s155 = sphi 0, %s141
      %s159 = sphi 0, %s159
      %s161 = sphi 0, %s159
      %s162 = sphi 0, %s161
      %s176 = sphi 0, %s162
      %s182 = sphi 0, %s184
      %s185 = sphi 0, %s182
      %s186 = sphi 0, %s185
      %s202 = sphi 0, %s186
    $region4: #{tpu_custom_call.1} parent=1 // loop_header_branch
      %23 = sbr.rel (%p21) target = $region8
    $region5: #{tpu_custom_call.1} parent=1 // loop_body
      %s25 = ssub.s32 %s20, 1
      %s26 = ssub.s32 %s20, 2
      %s27 = sadd.s32 %s20, 1
      %s28 = ssub.s32 %s20, %s27
      %p29 = scmp.eq.s32.totalorder %s28, 0
      %s31 = sadd.s32 %s30, 1
      %s32 = scalar_select %p29, %s30, %s31
      %p35 = pneg %p29
      %p36 = scmp.eq.s32.totalorder %s20, 1
      %p37 = por %p35, %p36
      %p38 = scmp.ne.s32.totalorder %s30, %s33
      %p39 = scmp.eq.s32.totalorder %s20, 0
      %p40 = por %p38, %p39
      %p41 = scmp.ne.s32.totalorder %s30, %s33
      %p42 = scmp.eq.s32.totalorder %s25, 1
      %p43 = por %p41, %p42
      %p44 = scmp.ne.s32.totalorder %s33, %s34
      %p45 = scmp.eq.s32.totalorder %s25, 0
      %p46 = por %p44, %p45
      %p47 = scmp.ne.s32.totalorder %s33, %s34
      %p48 = scmp.eq.s32.totalorder %s26, 1
      %p49 = por %p47, %p48
      %p51 = scmp.ne.s32.totalorder %s34, %s50
      %p52 = scmp.eq.s32.totalorder %s26, 0
      %p53 = por %p51, %p52
      %s55 = sadd.s32 %s54, 1
      %p58 = scmp.eq.s32.totalorder %s20, 1
      %p59 = scmp.ne.s32.totalorder %s54, %s56
      %p60 = scmp.eq.s32.totalorder %s20, 0
      %p61 = por %p59, %p60
      %p62 = scmp.ne.s32.totalorder %s54, %s56
      %p63 = scmp.eq.s32.totalorder %s25, 1
      %p64 = por %p62, %p63
      %p65 = scmp.ne.s32.totalorder %s56, %s57
      %p66 = scmp.eq.s32.totalorder %s25, 0
      %p67 = por %p65, %p66
      %p68 = scmp.ne.s32.totalorder %s56, %s57
      %p69 = scmp.eq.s32.totalorder %s26, 1
      %p70 = por %p68, %p69
      %p72 = scmp.ne.s32.totalorder %s57, %s71
      %p73 = scmp.eq.s32.totalorder %s26, 0
      %p74 = por %p72, %p73
      %s76 = sadd.s32 %s75, 1
      %p79 = scmp.eq.s32.totalorder %s20, 1
      %p80 = scmp.ne.s32.totalorder %s75, %s77
      %p81 = scmp.eq.s32.totalorder %s20, 0
      %p82 = por %p80, %p81
      %p83 = scmp.ne.s32.totalorder %s75, %s77
      %p84 = scmp.eq.s32.totalorder %s25, 1
      %p85 = por %p83, %p84
      %p86 = scmp.ne.s32.totalorder %s77, %s78
      %p87 = scmp.eq.s32.totalorder %s25, 0
      %p88 = por %p86, %p87
      %p89 = scmp.ne.s32.totalorder %s77, %s78
      %p90 = scmp.eq.s32.totalorder %s26, 1
      %p91 = por %p89, %p90
      %p93 = scmp.ne.s32.totalorder %s78, %s92
      %p94 = scmp.eq.s32.totalorder %s26, 0
      %p95 = por %p93, %p94
      %s97 = sadd.s32 %s96, 1
      %p100 = scmp.eq.s32.totalorder %s20, 1
      %p101 = scmp.ne.s32.totalorder %s96, %s98
      %p102 = scmp.eq.s32.totalorder %s20, 0
      %p103 = por %p101, %p102
      %p104 = scmp.ne.s32.totalorder %s96, %s98
      %p105 = scmp.eq.s32.totalorder %s25, 1
      %p106 = por %p104, %p105
      %p107 = scmp.ne.s32.totalorder %s98, %s99
      %p108 = scmp.eq.s32.totalorder %s25, 0
      %p109 = por %p107, %p108
      %p110 = scmp.ne.s32.totalorder %s98, %s99
      %p111 = scmp.eq.s32.totalorder %s26, 1
      %p112 = por %p110, %p111
      %p114 = scmp.ne.s32.totalorder %s99, %s113
      %p115 = scmp.eq.s32.totalorder %s26, 0
      %p116 = por %p114, %p115
      %s118 = sadd.s32 %s117, 1
      %p121 = scmp.eq.s32.totalorder %s20, 1
      %p122 = scmp.ne.s32.totalorder %s117, %s119
      %p123 = scmp.eq.s32.totalorder %s20, 0
      %p124 = por %p122, %p123
      %p125 = scmp.ne.s32.totalorder %s117, %s119
      %p126 = scmp.eq.s32.totalorder %s25, 1
      %p127 = por %p125, %p126
      %p128 = scmp.ne.s32.totalorder %s119, %s120
      %p129 = scmp.eq.s32.totalorder %s25, 0
      %p130 = por %p128, %p129
      %p131 = scmp.ne.s32.totalorder %s119, %s120
      %p132 = scmp.eq.s32.totalorder %s26, 1
      %p133 = por %p131, %p132
      %p135 = scmp.ne.s32.totalorder %s120, %s134
      %p136 = scmp.eq.s32.totalorder %s26, 0
      %p137 = por %p135, %p136
      %s139 = sadd.s32 %s138, 1
      %p142 = scmp.eq.s32.totalorder %s20, 1
      %p143 = scmp.ne.s32.totalorder %s138, %s140
      %p144 = scmp.eq.s32.totalorder %s20, 0
      %p145 = por %p143, %p144
      %p146 = scmp.ne.s32.totalorder %s138, %s140
      %p147 = scmp.eq.s32.totalorder %s25, 1
      %p148 = por %p146, %p147
      %p149 = scmp.ne.s32.totalorder %s140, %s141
      %p150 = scmp.eq.s32.totalorder %s25, 0
      %p151 = por %p149, %p150
      %p152 = scmp.ne.s32.totalorder %s140, %s141
      %p153 = scmp.eq.s32.totalorder %s26, 1
      %p154 = por %p152, %p153
      %p156 = scmp.ne.s32.totalorder %s141, %s155
      %p157 = scmp.eq.s32.totalorder %s26, 0
      %p158 = por %p156, %p157
      %s160 = sadd.s32 %s159, 1
      %p163 = scmp.eq.s32.totalorder %s20, 1
      %p164 = scmp.ne.s32.totalorder %s159, %s161
      %p165 = scmp.eq.s32.totalorder %s20, 0
      %p166 = por %p164, %p165
      %p167 = scmp.ne.s32.totalorder %s159, %s161
      %p168 = scmp.eq.s32.totalorder %s25, 1
      %p169 = por %p167, %p168
      %p170 = scmp.ne.s32.totalorder %s161, %s162
      %p171 = scmp.eq.s32.totalorder %s25, 0
      %p172 = por %p170, %p171
      %p173 = scmp.ne.s32.totalorder %s161, %s162
      %p174 = scmp.eq.s32.totalorder %s26, 1
      %p175 = por %p173, %p174
      %p177 = scmp.ne.s32.totalorder %s162, %s176
      %p178 = scmp.eq.s32.totalorder %s26, 0
      %p179 = por %p177, %p178
      %s180 = ssub.s32 %s20, %s27
      %p181 = scmp.eq.s32.totalorder %s180, 0
      %s183 = sadd.s32 %s182, 1
      %s184 = scalar_select %p181, %s182, %s183
      %p187 = pneg %p181
      %p188 = scmp.eq.s32.totalorder %s20, 1
      %p189 = por %p187, %p188
      %p190 = scmp.ne.s32.totalorder %s182, %s185
      %p191 = scmp.eq.s32.totalorder %s20, 0
      %p192 = por %p190, %p191
      %p193 = scmp.ne.s32.totalorder %s182, %s185
      %p194 = scmp.eq.s32.totalorder %s25, 1
      %p195 = por %p193, %p194
      %p196 = scmp.ne.s32.totalorder %s185, %s186
      %p197 = scmp.eq.s32.totalorder %s25, 0
      %p198 = por %p196, %p197
      %p199 = scmp.ne.s32.totalorder %s185, %s186
      %p200 = scmp.eq.s32.totalorder %s26, 1
      %p201 = por %p199, %p200
      %p203 = scmp.ne.s32.totalorder %s186, %s202
      %p204 = scmp.eq.s32.totalorder %s26, 0
      %p205 = por %p203, %p204
      %p206 = scmp.le.s32.totalorder 1, %s20
      %p207 = scmp.lt.s32.totalorder %s20, 3
      %p208 = pnand %p206, %p207
      %p209 = pneg %p208
      // Predicated region
      $region9: #{tpu_custom_call.1} parent=5 // pred_check
        _
      $region10: #{tpu_custom_call.1} parent=5 // pred_check_branch
        %211 = sbr.rel (%p208) target = $region12
      $region11: #{tpu_custom_call.1} parent=5 // pred_region
        %s212 = ssub.s32 %s20, 1
        // Predicated region
        $region13: #{tpu_custom_call.1} parent=11 // pred_check
          %p213 = pneg %p67
        $region14: #{tpu_custom_call.1} parent=11 // pred_check_branch
          %215 = sbr.rel (%p213) target = $region16
        $region15: #{tpu_custom_call.1} parent=11 // pred_region
          %217 = vsyncadd [#allocation6], 0
          %s218 = sshll.u32 %s1, 4
          %s219 = int_to_ptr.hbm [resolvable:$true] %s218
          %s220 = sshll.u32 [#allocation5], 4
          %s221 = int_to_ptr.vmem [resolvable:$true] %s220
          %226 = dma.hbm_to_vmem [thread:$0]  %s219, 1152, %s221, [#allocation6], 64, 64, 4
        $region16: #{tpu_custom_call.1} parent=11 // pred_fallthru
          _
        // Predicated region
        $region17: #{tpu_custom_call.1} parent=11 // pred_check
          %p227 = pneg %p88
        $region18: #{tpu_custom_call.1} parent=11 // pred_check_branch
          %229 = sbr.rel (%p227) target = $region20
        $region19: #{tpu_custom_call.1} parent=11 // pred_region
          _
        $region20: #{tpu_custom_call.1} parent=11 // pred_fallthru
          _
        // Predicated region
        $region21: #{tpu_custom_call.1} parent=11 // pred_check
          %p230 = pneg %p109
        $region22: #{tpu_custom_call.1} parent=11 // pred_check_branch
          %232 = sbr.rel (%p230) target = $region24
        $region23: #{tpu_custom_call.1} parent=11 // pred_region
          _
        $region24: #{tpu_custom_call.1} parent=11 // pred_fallthru
          _
        // Predicated region
        $region25: #{tpu_custom_call.1} parent=11 // pred_check
          %p233 = pneg %p130
        $region26: #{tpu_custom_call.1} parent=11 // pred_check_branch
          %235 = sbr.rel (%p233) target = $region28
        $region27: #{tpu_custom_call.1} parent=11 // pred_region
          _
        $region28: #{tpu_custom_call.1} parent=11 // pred_fallthru
          _
        // Predicated region
        $region29: #{tpu_custom_call.1} parent=11 // pred_check
          %p236 = pneg %p151
        $region30: #{tpu_custom_call.1} parent=11 // pred_check_branch
          %238 = sbr.rel (%p236) target = $region32
        $region31: #{tpu_custom_call.1} parent=11 // pred_region
          _
        $region32: #{tpu_custom_call.1} parent=11 // pred_fallthru
          _
        // Predicated region
        $region33: #{tpu_custom_call.1} parent=11 // pred_check
          %p239 = pneg %p172
        $region34: #{tpu_custom_call.1} parent=11 // pred_check_branch
          %241 = sbr.rel (%p239) target = $region36
        $region35: #{tpu_custom_call.1} parent=11 // pred_region
          _
        $region36: #{tpu_custom_call.1} parent=11 // pred_fallthru
          _
      $region12: #{tpu_custom_call.1} parent=5 // pred_fallthru
        _
      %p242 = scmp.lt.s32.totalorder %s20, 2
      // Predicated region
      $region37: #{tpu_custom_call.1} parent=5 // pred_check
        %p243 = pneg %p242
      $region38: #{tpu_custom_call.1} parent=5 // pred_check_branch
        %245 = sbr.rel (%p243) target = $region40
      $region39: #{tpu_custom_call.1} parent=5 // pred_region
        // Predicated region
        $region41: #{tpu_custom_call.1} parent=39 // pred_check
          %p246 = pneg %p40
        $region42: #{tpu_custom_call.1} parent=39 // pred_check_branch
          %248 = sbr.rel (%p246) target = $region44
        $region43: #{tpu_custom_call.1} parent=39 // pred_region
          %s249 = sand.u32 %s30, 1
          %s250 = scalar_lea.sflag [#allocation3], %s249
          %s251 = sand.u32 %s30, 1
          %s252 = smul.addr %s251, 24
          %s253 = scalar_lea.vmem [#allocation2], %s252
          %255 = vsyncadd %s250, 0
          %s256 = smul.addr %s20, 6
          %s257 = smul.addr %s256, 4
          %s258 = scalar_lea.hbm %s0, %s257
          %s259 = sshll.u32 %s258, 4
          %s260 = int_to_ptr.hbm [resolvable:$true] %s259
          %s261 = sshll.u32 %s253, 4
          %s262 = int_to_ptr.vmem [resolvable:$true] %s261
          %267 = dma.hbm_to_vmem [thread:$0]  %s260, 384, %s262, %s250, 192, 192, 12
        $region44: #{tpu_custom_call.1} parent=39 // pred_fallthru
          _
      $region40: #{tpu_custom_call.1} parent=5 // pred_fallthru
        _
      %p268 = scmp.le.s32.totalorder 1, %s20
      %p269 = scmp.lt.s32.totalorder %s20, 3
      %p270 = pnand %p268, %p269
      %p271 = pneg %p270
      // Predicated region
      $region45: #{tpu_custom_call.1} parent=5 // pred_check
        _
      $region46: #{tpu_custom_call.1} parent=5 // pred_check_branch
        %273 = sbr.rel (%p270) target = $region48
      $region47: #{tpu_custom_call.1} parent=5 // pred_region
        %s274 = ssub.s32 %s20, 1
        %s275 = sand.u32 %s33, 1
        %s276 = scalar_lea.sflag [#allocation3], %s275
        %s277 = sand.u32 %s33, 1
        %s278 = smul.addr %s277, 24
        %s279 = scalar_lea.vmem [#allocation2], %s278
        // Predicated region
        $region49: #{tpu_custom_call.1} parent=47 // pred_check
          %p280 = pneg %p46
        $region50: #{tpu_custom_call.1} parent=47 // pred_check_branch
          %282 = sbr.rel (%p280) target = $region52
        $region51: #{tpu_custom_call.1} parent=47 // pred_region
          %284 = dma.done %s276, 384
        $region52: #{tpu_custom_call.1} parent=47 // pred_fallthru
          _
        // Predicated region
        $region53: #{tpu_custom_call.1} parent=47 // pred_check
          %p285 = pneg %p67
        $region54: #{tpu_custom_call.1} parent=47 // pred_check_branch
          %287 = sbr.rel (%p285) target = $region56
        $region55: #{tpu_custom_call.1} parent=47 // pred_region
          %289 = dma.done [#allocation6], 1152
        $region56: #{tpu_custom_call.1} parent=47 // pred_fallthru
          _
        %s290 = sand.u32 %s33, 1
        %s291 = scalar_lea.sflag [#allocation3], %s290
        %s292 = sand.u32 %s33, 1
        %s293 = smul.addr %s292, 24
        %s294 = scalar_lea.vmem [#allocation2], %s293
        %p295 = pneg %p46
        %p296 = pneg %p43
        %p297 = pneg %p67
        %p298 = pneg %p64
        %p299 = pneg %p88
        %p300 = pneg %p85
        %p301 = pneg %p109
        %p302 = pneg %p106
        %p303 = pneg %p130
        %p304 = pneg %p127
        %p305 = pneg %p151
        %p306 = pneg %p148
        %p307 = pneg %p172
        %p308 = pneg %p169
        %p309 = pneg %p198
        %p310 = pneg %p195
        %s311 = sand.u32 %s185, 1
        %s312 = scalar_lea.sflag [#allocation4], %s311
        %s313 = sand.u32 %s185, 1
        %s314 = smul.addr %s313, 32
        %s315 = scalar_lea.vmem [#allocation7], %s314
        %v317 = vld [vmem:[#allocation5] sm:$0xf]
        %v318 = vld [vmem:[#allocation5 + $0x4] sm:$0xf]
        %v319 = vld [vmem:[%s279] sm:$0xff]
        %v320 = vld [vmem:[%s279 + $0x8] sm:$0xf]
        %v321 = vld [vmem:[%s279 + $0xc] sm:$0xff]
        %v322 = vld [vmem:[%s279 + $0x14] sm:$0xf]
        %s323 = scalar_lea.vmem [#allocation5], 8
        %v324 = vld [vmem:[%s323] sm:$0xf]
        %v325 = vld [vmem:[%s323 + $0x4] sm:$0xf]
        %v328 = vunpack.c.l.b16 %v324
        %v329 = vunpack.c.l.b16 %v325
        %v330 = vpack.c.b16 %v329, %v328
        %v335 = vunpack.c.l.b16 %v319
        %v336 = vunpack.c.h.b16 %v319
        %v337 = vunpack.c.l.b16 %v320
        %v338 = vunpack.c.l.b16 %v321
        %v339 = vunpack.c.h.b16 %v321
        %v340 = vunpack.c.l.b16 %v322
        %v341 = vpack.c.b16 %v338, %v335
        %v342 = vpack.c.b16 %v339, %v336
        %v343 = vpack.c.b16 %v340, %v337
        %344 = vrot.lane.b32.xlu0 %v341, 127
        %v345 = vpop.permute.xlu0 %344
        %346 = vrot.lane.b32.xlu0 %v342, 127
        %v347 = vpop.permute.xlu0 %346
        %348 = vrot.lane.b32.xlu0 %v343, 127
        %v349 = vpop.permute.xlu0 %348
        %vm350 = vcmask 1039360
        %v351 = vsel %vm350, %v345, %v347
        %v352 = vsel %vm350, %v347, %v349
        %vm356 = vcmask 130048
        %v358 = vsel %vm356, %v330, 0
        %360 = vmatpush.bf16.msra.mxu0 0
        %361 = vmatpush.bf16.msra.mxu0 0
        %362 = vmatpush.bf16.msra.mxu0 0
        %363 = vmatpush.bf16.msra.mxu0 0
        %364 = vmatpush.bf16.msra.mxu0 0
        %365 = vmatpush.bf16.msra.mxu0 0
        %366 = vmatpush.bf16.msra.mxu0 0
        %367 = vmatpush.bf16.msra.mxu0 %v351
        %368 = vmatmul.bf16.gmra.mxu0 %v358
        %v369 = vpop.f32.mrf.mxu0
        %v370 = vadd.f32 0.0, %v369
        %v371 = vpop.f32.mrf.mxu0
        %v372 = vadd.f32 0.0, %v371
        %373 = vdwg.mxu0
        %374 = vmatpush.bf16.msra.mxu0 0
        %375 = vmatpush.bf16.msra.mxu0 0
        %376 = vmatpush.bf16.msra.mxu0 0
        %377 = vmatpush.bf16.msra.mxu0 0
        %378 = vmatpush.bf16.msra.mxu0 0
        %379 = vmatpush.bf16.msra.mxu0 0
        %380 = vmatpush.bf16.msra.mxu0 0
        %381 = vmatpush.bf16.msra.mxu0 %v352
        %382 = vmatmul.bf16.gmra.mxu0 %v358
        %v383 = vpop.f32.mrf.mxu0
        %v384 = vadd.f32 0.0, %v383
        %v385 = vpop.f32.mrf.mxu0
        %v386 = vadd.f32 0.0, %v385
        %387 = vdwg.mxu0
        %388 = vmatpush.bf16.msra.mxu0 0
        %389 = vmatpush.bf16.msra.mxu0 0
        %390 = vmatpush.bf16.msra.mxu0 0
        %391 = vmatpush.bf16.msra.mxu0 0
        %392 = vmatpush.bf16.msra.mxu0 0
        %393 = vmatpush.bf16.msra.mxu0 0
        %394 = vmatpush.bf16.msra.mxu0 0
        %395 = vmatpush.bf16.msra.mxu0 %v349
        %396 = vmatmul.bf16.gmra.mxu0 %v358
        %v397 = vpop.f32.mrf.mxu0
        %v398 = vadd.f32 0.0, %v397
        %v399 = vpop.f32.mrf.mxu0
        %v400 = vadd.f32 0.0, %v399
        %401 = vdwg.mxu0
        %v404 = vunpack.c.l.b16 %v317
        %v405 = vunpack.c.l.b16 %v318
        %v406 = vpack.c.b16 %v405, %v404
        %v411 = vsel %vm356, %v406, 0
        %413 = vmatpush.bf16.msra.mxu0 0
        %414 = vmatpush.bf16.msra.mxu0 0
        %415 = vmatpush.bf16.msra.mxu0 0
        %416 = vmatpush.bf16.msra.mxu0 0
        %417 = vmatpush.bf16.msra.mxu0 0
        %418 = vmatpush.bf16.msra.mxu0 0
        %419 = vmatpush.bf16.msra.mxu0 0
        %420 = vmatpush.bf16.msra.mxu0 %v341
        %421 = vmatmul.bf16.gmra.mxu0 %v411
        %v422 = vpop.f32.mrf.mxu0
        %v423 = vadd.f32 %v370, %v422
        %v424 = vpop.f32.mrf.mxu0
        %v425 = vadd.f32 %v372, %v424
        %426 = vdwg.mxu0
        %427 = vmatpush.bf16.msra.mxu0 0
        %428 = vmatpush.bf16.msra.mxu0 0
        %429 = vmatpush.bf16.msra.mxu0 0
        %430 = vmatpush.bf16.msra.mxu0 0
        %431 = vmatpush.bf16.msra.mxu0 0
        %432 = vmatpush.bf16.msra.mxu0 0
        %433 = vmatpush.bf16.msra.mxu0 0
        %434 = vmatpush.bf16.msra.mxu0 %v342
        %435 = vmatmul.bf16.gmra.mxu0 %v411
        %v436 = vpop.f32.mrf.mxu0
        %v437 = vadd.f32 %v384, %v436
        %v438 = vpop.f32.mrf.mxu0
        %v439 = vadd.f32 %v386, %v438
        %440 = vdwg.mxu0
        %441 = vmatpush.bf16.msra.mxu0 0
        %442 = vmatpush.bf16.msra.mxu0 0
        %443 = vmatpush.bf16.msra.mxu0 0
        %444 = vmatpush.bf16.msra.mxu0 0
        %445 = vmatpush.bf16.msra.mxu0 0
        %446 = vmatpush.bf16.msra.mxu0 0
        %447 = vmatpush.bf16.msra.mxu0 0
        %448 = vmatpush.bf16.msra.mxu0 %v343
        %449 = vmatmul.bf16.gmra.mxu0 %v411
        %v450 = vpop.f32.mrf.mxu0
        %v451 = vadd.f32 %v398, %v450
        %v452 = vpop.f32.mrf.mxu0
        %v453 = vadd.f32 %v400, %v452
        %454 = vdwg.mxu0
        %s455 = scalar_lea.vmem [#allocation5], 16
        %v456 = vld [vmem:[%s455] sm:$0xf]
        %v457 = vld [vmem:[%s455 + $0x4] sm:$0xf]
        %v460 = vunpack.c.l.b16 %v456
        %v461 = vunpack.c.l.b16 %v457
        %v462 = vpack.c.b16 %v461, %v460
        %463 = vrot.lane.b32.xlu0 %v341, 126
        %v464 = vpop.permute.xlu0 %463
        %465 = vrot.lane.b32.xlu0 %v342, 126
        %v466 = vpop.permute.xlu0 %465
        %467 = vrot.lane.b32.xlu0 %v343, 126
        %v468 = vpop.permute.xlu0 %467
        %vm469 = vcmask 1031168
        %v470 = vsel %vm469, %v464, %v466
        %v471 = vsel %vm469, %v466, %v468
        %v476 = vsel %vm356, %v462, 0
        %478 = vmatpush.bf16.msra.mxu0 0
        %479 = vmatpush.bf16.msra.mxu0 0
        %480 = vmatpush.bf16.msra.mxu0 0
        %481 = vmatpush.bf16.msra.mxu0 0
        %482 = vmatpush.bf16.msra.mxu0 0
        %483 = vmatpush.bf16.msra.mxu0 0
        %484 = vmatpush.bf16.msra.mxu0 0
        %485 = vmatpush.bf16.msra.mxu0 %v470
        %486 = vmatmul.bf16.gmra.mxu0 %v476
        %v487 = vpop.f32.mrf.mxu0
        %v488 = vadd.f32 0.0, %v487
        %v489 = vpop.f32.mrf.mxu0
        %v490 = vadd.f32 0.0, %v489
        %491 = vdwg.mxu0
        %492 = vmatpush.bf16.msra.mxu0 0
        %493 = vmatpush.bf16.msra.mxu0 0
        %494 = vmatpush.bf16.msra.mxu0 0
        %495 = vmatpush.bf16.msra.mxu0 0
        %496 = vmatpush.bf16.msra.mxu0 0
        %497 = vmatpush.bf16.msra.mxu0 0
        %498 = vmatpush.bf16.msra.mxu0 0
        %499 = vmatpush.bf16.msra.mxu0 %v471
        %500 = vmatmul.bf16.gmra.mxu0 %v476
        %v501 = vpop.f32.mrf.mxu0
        %v502 = vadd.f32 0.0, %v501
        %v503 = vpop.f32.mrf.mxu0
        %v504 = vadd.f32 0.0, %v503
        %505 = vdwg.mxu0
        %506 = vmatpush.bf16.msra.mxu0 0
        %507 = vmatpush.bf16.msra.mxu0 0
        %508 = vmatpush.bf16.msra.mxu0 0
        %509 = vmatpush.bf16.msra.mxu0 0
        %510 = vmatpush.bf16.msra.mxu0 0
        %511 = vmatpush.bf16.msra.mxu0 0
        %512 = vmatpush.bf16.msra.mxu0 0
        %513 = vmatpush.bf16.msra.mxu0 %v468
        %514 = vmatmul.bf16.gmra.mxu0 %v476
        %v515 = vpop.f32.mrf.mxu0
        %v516 = vadd.f32 0.0, %v515
        %v517 = vpop.f32.mrf.mxu0
        %v518 = vadd.f32 0.0, %v517
        %519 = vdwg.mxu0
        %v520 = vadd.f32 %v423, %v488
        %v521 = vadd.f32 %v437, %v502
        %v522 = vadd.f32 %v451, %v516
        %v523 = vadd.f32 %v425, %v490
        %v524 = vadd.f32 %v439, %v504
        %v525 = vadd.f32 %v453, %v518
        %s526 = scalar_lea.vmem [#allocation5], 24
        %v527 = vld [vmem:[%s526] sm:$0xf]
        %v528 = vld [vmem:[%s526 + $0x4] sm:$0xf]
        %v531 = vunpack.c.l.b16 %v527
        %v532 = vunpack.c.l.b16 %v528
        %v533 = vpack.c.b16 %v532, %v531
        %534 = vrot.lane.b32.xlu0 %v341, 110
        %v535 = vpop.permute.xlu0 %534
        %536 = vrot.lane.b32.xlu0 %v342, 110
        %v537 = vpop.permute.xlu0 %536
        %538 = vrot.lane.b32.xlu0 %v343, 110
        %v539 = vpop.permute.xlu0 %538
        %vm540 = vcmask 900096
        %v541 = vsel %vm540, %v535, %v537
        %v542 = vsel %vm540, %v537, %v539
        %v547 = vsel %vm356, %v533, 0
        %549 = vmatpush.bf16.msra.mxu0 0
        %550 = vmatpush.bf16.msra.mxu0 0
        %551 = vmatpush.bf16.msra.mxu0 0
        %552 = vmatpush.bf16.msra.mxu0 0
        %553 = vmatpush.bf16.msra.mxu0 0
        %554 = vmatpush.bf16.msra.mxu0 0
        %555 = vmatpush.bf16.msra.mxu0 0
        %556 = vmatpush.bf16.msra.mxu0 %v541
        %557 = vmatmul.bf16.gmra.mxu0 %v547
        %v558 = vpop.f32.mrf.mxu0
        %v559 = vadd.f32 0.0, %v558
        %v560 = vpop.f32.mrf.mxu0
        %v561 = vadd.f32 0.0, %v560
        %562 = vdwg.mxu0
        %563 = vmatpush.bf16.msra.mxu0 0
        %564 = vmatpush.bf16.msra.mxu0 0
        %565 = vmatpush.bf16.msra.mxu0 0
        %566 = vmatpush.bf16.msra.mxu0 0
        %567 = vmatpush.bf16.msra.mxu0 0
        %568 = vmatpush.bf16.msra.mxu0 0
        %569 = vmatpush.bf16.msra.mxu0 0
        %570 = vmatpush.bf16.msra.mxu0 %v542
        %571 = vmatmul.bf16.gmra.mxu0 %v547
        %v572 = vpop.f32.mrf.mxu0
        %v573 = vadd.f32 0.0, %v572
        %v574 = vpop.f32.mrf.mxu0
        %v575 = vadd.f32 0.0, %v574
        %576 = vdwg.mxu0
        %577 = vmatpush.bf16.msra.mxu0 0
        %578 = vmatpush.bf16.msra.mxu0 0
        %579 = vmatpush.bf16.msra.mxu0 0
        %580 = vmatpush.bf16.msra.mxu0 0
        %581 = vmatpush.bf16.msra.mxu0 0
        %582 = vmatpush.bf16.msra.mxu0 0
        %583 = vmatpush.bf16.msra.mxu0 0
        %584 = vmatpush.bf16.msra.mxu0 %v539
        %585 = vmatmul.bf16.gmra.mxu0 %v547
        %v586 = vpop.f32.mrf.mxu0
        %v587 = vadd.f32 0.0, %v586
        %v588 = vpop.f32.mrf.mxu0
        %v589 = vadd.f32 0.0, %v588
        %590 = vdwg.mxu0
        %v591 = vadd.f32 %v520, %v559
        %v592 = vadd.f32 %v521, %v573
        %v593 = vadd.f32 %v522, %v587
        %v594 = vadd.f32 %v523, %v561
        %v595 = vadd.f32 %v524, %v575
        %v596 = vadd.f32 %v525, %v589
        %s597 = scalar_lea.vmem [#allocation5], 32
        %v598 = vld [vmem:[%s597] sm:$0xf]
        %v599 = vld [vmem:[%s597 + $0x4] sm:$0xf]
        %v602 = vunpack.c.l.b16 %v598
        %v603 = vunpack.c.l.b16 %v599
        %v604 = vpack.c.b16 %v603, %v602
        %605 = vrot.lane.b32.xlu0 %v341, 109
        %v606 = vpop.permute.xlu0 %605
        %607 = vrot.lane.b32.xlu0 %v342, 109
        %v608 = vpop.permute.xlu0 %607
        %609 = vrot.lane.b32.xlu0 %v343, 109
        %v610 = vpop.permute.xlu0 %609
        %vm611 = vcmask 891904
        %v612 = vsel %vm611, %v606, %v608
        %v613 = vsel %vm611, %v608, %v610
        %v618 = vsel %vm356, %v604, 0
        %620 = vmatpush.bf16.msra.mxu0 0
        %621 = vmatpush.bf16.msra.mxu0 0
        %622 = vmatpush.bf16.msra.mxu0 0
        %623 = vmatpush.bf16.msra.mxu0 0
        %624 = vmatpush.bf16.msra.mxu0 0
        %625 = vmatpush.bf16.msra.mxu0 0
        %626 = vmatpush.bf16.msra.mxu0 0
        %627 = vmatpush.bf16.msra.mxu0 %v612
        %628 = vmatmul.bf16.gmra.mxu0 %v618
        %v629 = vpop.f32.mrf.mxu0
        %v630 = vadd.f32 0.0, %v629
        %v631 = vpop.f32.mrf.mxu0
        %v632 = vadd.f32 0.0, %v631
        %633 = vdwg.mxu0
        %634 = vmatpush.bf16.msra.mxu0 0
        %635 = vmatpush.bf16.msra.mxu0 0
        %636 = vmatpush.bf16.msra.mxu0 0
        %637 = vmatpush.bf16.msra.mxu0 0
        %638 = vmatpush.bf16.msra.mxu0 0
        %639 = vmatpush.bf16.msra.mxu0 0
        %640 = vmatpush.bf16.msra.mxu0 0
        %641 = vmatpush.bf16.msra.mxu0 %v613
        %642 = vmatmul.bf16.gmra.mxu0 %v618
        %v643 = vpop.f32.mrf.mxu0
        %v644 = vadd.f32 0.0, %v643
        %v645 = vpop.f32.mrf.mxu0
        %v646 = vadd.f32 0.0, %v645
        %647 = vdwg.mxu0
        %648 = vmatpush.bf16.msra.mxu0 0
        %649 = vmatpush.bf16.msra.mxu0 0
        %650 = vmatpush.bf16.msra.mxu0 0
        %651 = vmatpush.bf16.msra.mxu0 0
        %652 = vmatpush.bf16.msra.mxu0 0
        %653 = vmatpush.bf16.msra.mxu0 0
        %654 = vmatpush.bf16.msra.mxu0 0
        %655 = vmatpush.bf16.msra.mxu0 %v610
        %656 = vmatmul.bf16.gmra.mxu0 %v618
        %v657 = vpop.f32.mrf.mxu0
        %v658 = vadd.f32 0.0, %v657
        %v659 = vpop.f32.mrf.mxu0
        %v660 = vadd.f32 0.0, %v659
        %661 = vdwg.mxu0
        %v662 = vadd.f32 %v591, %v630
        %v663 = vadd.f32 %v592, %v644
        %v664 = vadd.f32 %v593, %v658
        %v665 = vadd.f32 %v594, %v632
        %v666 = vadd.f32 %v595, %v646
        %v667 = vadd.f32 %v596, %v660
        %s668 = scalar_lea.vmem [#allocation5], 40
        %v669 = vld [vmem:[%s668] sm:$0xf]
        %v670 = vld [vmem:[%s668 + $0x4] sm:$0xf]
        %v673 = vunpack.c.l.b16 %v669
        %v674 = vunpack.c.l.b16 %v670
        %v675 = vpack.c.b16 %v674, %v673
        %676 = vrot.lane.b32.xlu0 %v341, 108
        %v677 = vpop.permute.xlu0 %676
        %678 = vrot.lane.b32.xlu0 %v342, 108
        %v679 = vpop.permute.xlu0 %678
        %680 = vrot.lane.b32.xlu0 %v343, 108
        %v681 = vpop.permute.xlu0 %680
        %vm682 = vcmask 883712
        %v683 = vsel %vm682, %v677, %v679
        %v684 = vsel %vm682, %v679, %v681
        %v689 = vsel %vm356, %v675, 0
        %691 = vmatpush.bf16.msra.mxu0 0
        %692 = vmatpush.bf16.msra.mxu0 0
        %693 = vmatpush.bf16.msra.mxu0 0
        %694 = vmatpush.bf16.msra.mxu0 0
        %695 = vmatpush.bf16.msra.mxu0 0
        %696 = vmatpush.bf16.msra.mxu0 0
        %697 = vmatpush.bf16.msra.mxu0 0
        %698 = vmatpush.bf16.msra.mxu0 %v683
        %699 = vmatmul.bf16.gmra.mxu0 %v689
        %v700 = vpop.f32.mrf.mxu0
        %v701 = vadd.f32 0.0, %v700
        %v702 = vpop.f32.mrf.mxu0
        %v703 = vadd.f32 0.0, %v702
        %704 = vdwg.mxu0
        %705 = vmatpush.bf16.msra.mxu0 0
        %706 = vmatpush.bf16.msra.mxu0 0
        %707 = vmatpush.bf16.msra.mxu0 0
        %708 = vmatpush.bf16.msra.mxu0 0
        %709 = vmatpush.bf16.msra.mxu0 0
        %710 = vmatpush.bf16.msra.mxu0 0
        %711 = vmatpush.bf16.msra.mxu0 0
        %712 = vmatpush.bf16.msra.mxu0 %v684
        %713 = vmatmul.bf16.gmra.mxu0 %v689
        %v714 = vpop.f32.mrf.mxu0
        %v715 = vadd.f32 0.0, %v714
        %v716 = vpop.f32.mrf.mxu0
        %v717 = vadd.f32 0.0, %v716
        %718 = vdwg.mxu0
        %719 = vmatpush.bf16.msra.mxu0 0
        %720 = vmatpush.bf16.msra.mxu0 0
        %721 = vmatpush.bf16.msra.mxu0 0
        %722 = vmatpush.bf16.msra.mxu0 0
        %723 = vmatpush.bf16.msra.mxu0 0
        %724 = vmatpush.bf16.msra.mxu0 0
        %725 = vmatpush.bf16.msra.mxu0 0
        %726 = vmatpush.bf16.msra.mxu0 %v681
        %727 = vmatmul.bf16.gmra.mxu0 %v689
        %v728 = vpop.f32.mrf.mxu0
        %v729 = vadd.f32 0.0, %v728
        %v730 = vpop.f32.mrf.mxu0
        %v731 = vadd.f32 0.0, %v730
        %732 = vdwg.mxu0
        %v733 = vadd.f32 %v662, %v701
        %v734 = vadd.f32 %v663, %v715
        %v735 = vadd.f32 %v664, %v729
        %v736 = vadd.f32 %v665, %v703
        %v737 = vadd.f32 %v666, %v717
        %v738 = vadd.f32 %v667, %v731
        %s739 = scalar_lea.vmem [#allocation5], 48
        %v740 = vld [vmem:[%s739] sm:$0xf]
        %v741 = vld [vmem:[%s739 + $0x4] sm:$0xf]
        %v744 = vunpack.c.l.b16 %v740
        %v745 = vunpack.c.l.b16 %v741
        %v746 = vpack.c.b16 %v745, %v744
        %747 = vrot.lane.b32.xlu0 %v341, 92
        %v748 = vpop.permute.xlu0 %747
        %749 = vrot.lane.b32.xlu0 %v342, 92
        %v750 = vpop.permute.xlu0 %749
        %751 = vrot.lane.b32.xlu0 %v343, 92
        %v752 = vpop.permute.xlu0 %751
        %vm753 = vcmask 752640
        %v754 = vsel %vm753, %v748, %v750
        %v755 = vsel %vm753, %v750, %v752
        %v760 = vsel %vm356, %v746, 0
        %762 = vmatpush.bf16.msra.mxu0 0
        %763 = vmatpush.bf16.msra.mxu0 0
        %764 = vmatpush.bf16.msra.mxu0 0
        %765 = vmatpush.bf16.msra.mxu0 0
        %766 = vmatpush.bf16.msra.mxu0 0
        %767 = vmatpush.bf16.msra.mxu0 0
        %768 = vmatpush.bf16.msra.mxu0 0
        %769 = vmatpush.bf16.msra.mxu0 %v754
        %770 = vmatmul.bf16.gmra.mxu0 %v760
        %v771 = vpop.f32.mrf.mxu0
        %v772 = vadd.f32 0.0, %v771
        %v773 = vpop.f32.mrf.mxu0
        %v774 = vadd.f32 0.0, %v773
        %775 = vdwg.mxu0
        %776 = vmatpush.bf16.msra.mxu0 0
        %777 = vmatpush.bf16.msra.mxu0 0
        %778 = vmatpush.bf16.msra.mxu0 0
        %779 = vmatpush.bf16.msra.mxu0 0
        %780 = vmatpush.bf16.msra.mxu0 0
        %781 = vmatpush.bf16.msra.mxu0 0
        %782 = vmatpush.bf16.msra.mxu0 0
        %783 = vmatpush.bf16.msra.mxu0 %v755
        %784 = vmatmul.bf16.gmra.mxu0 %v760
        %v785 = vpop.f32.mrf.mxu0
        %v786 = vadd.f32 0.0, %v785
        %v787 = vpop.f32.mrf.mxu0
        %v788 = vadd.f32 0.0, %v787
        %789 = vdwg.mxu0
        %790 = vmatpush.bf16.msra.mxu0 0
        %791 = vmatpush.bf16.msra.mxu0 0
        %792 = vmatpush.bf16.msra.mxu0 0
        %793 = vmatpush.bf16.msra.mxu0 0
        %794 = vmatpush.bf16.msra.mxu0 0
        %795 = vmatpush.bf16.msra.mxu0 0
        %796 = vmatpush.bf16.msra.mxu0 0
        %797 = vmatpush.bf16.msra.mxu0 %v752
        %798 = vmatmul.bf16.gmra.mxu0 %v760
        %v799 = vpop.f32.mrf.mxu0
        %v800 = vadd.f32 0.0, %v799
        %v801 = vpop.f32.mrf.mxu0
        %v802 = vadd.f32 0.0, %v801
        %803 = vdwg.mxu0
        %v804 = vadd.f32 %v733, %v772
        %v805 = vadd.f32 %v734, %v786
        %v806 = vadd.f32 %v735, %v800
        %v807 = vadd.f32 %v736, %v774
        %v808 = vadd.f32 %v737, %v788
        %v809 = vadd.f32 %v738, %v802
        %s810 = scalar_lea.vmem [#allocation5], 56
        %v811 = vld [vmem:[%s810] sm:$0xf]
        %v812 = vld [vmem:[%s810 + $0x4] sm:$0xf]
        %v815 = vunpack.c.l.b16 %v811
        %v816 = vunpack.c.l.b16 %v812
        %v817 = vpack.c.b16 %v816, %v815
        %818 = vrot.lane.b32.xlu0 %v341, 91
        %v819 = vpop.permute.xlu0 %818
        %820 = vrot.lane.b32.xlu0 %v342, 91
        %v821 = vpop.permute.xlu0 %820
        %822 = vrot.lane.b32.xlu0 %v343, 91
        %v823 = vpop.permute.xlu0 %822
        %vm824 = vcmask 744448
        %v825 = vsel %vm824, %v819, %v821
        %v826 = vsel %vm824, %v821, %v823
        %v831 = vsel %vm356, %v817, 0
        %833 = vmatpush.bf16.msra.mxu0 0
        %834 = vmatpush.bf16.msra.mxu0 0
        %835 = vmatpush.bf16.msra.mxu0 0
        %836 = vmatpush.bf16.msra.mxu0 0
        %837 = vmatpush.bf16.msra.mxu0 0
        %838 = vmatpush.bf16.msra.mxu0 0
        %839 = vmatpush.bf16.msra.mxu0 0
        %840 = vmatpush.bf16.msra.mxu0 %v825
        %841 = vmatmul.bf16.gmra.mxu0 %v831
        %v842 = vpop.f32.mrf.mxu0
        %v843 = vadd.f32 0.0, %v842
        %v844 = vpop.f32.mrf.mxu0
        %v845 = vadd.f32 0.0, %v844
        %846 = vdwg.mxu0
        %847 = vmatpush.bf16.msra.mxu0 0
        %848 = vmatpush.bf16.msra.mxu0 0
        %849 = vmatpush.bf16.msra.mxu0 0
        %850 = vmatpush.bf16.msra.mxu0 0
        %851 = vmatpush.bf16.msra.mxu0 0
        %852 = vmatpush.bf16.msra.mxu0 0
        %853 = vmatpush.bf16.msra.mxu0 0
        %854 = vmatpush.bf16.msra.mxu0 %v826
        %855 = vmatmul.bf16.gmra.mxu0 %v831
        %v856 = vpop.f32.mrf.mxu0
        %v857 = vadd.f32 0.0, %v856
        %v858 = vpop.f32.mrf.mxu0
        %v859 = vadd.f32 0.0, %v858
        %860 = vdwg.mxu0
        %861 = vmatpush.bf16.msra.mxu0 0
        %862 = vmatpush.bf16.msra.mxu0 0
        %863 = vmatpush.bf16.msra.mxu0 0
        %864 = vmatpush.bf16.msra.mxu0 0
        %865 = vmatpush.bf16.msra.mxu0 0
        %866 = vmatpush.bf16.msra.mxu0 0
        %867 = vmatpush.bf16.msra.mxu0 0
        %868 = vmatpush.bf16.msra.mxu0 %v823
        %869 = vmatmul.bf16.gmra.mxu0 %v831
        %v870 = vpop.f32.mrf.mxu0
        %v871 = vadd.f32 0.0, %v870
        %v872 = vpop.f32.mrf.mxu0
        %v873 = vadd.f32 0.0, %v872
        %874 = vdwg.mxu0
        %v875 = vadd.f32 %v804, %v843
        %v876 = vadd.f32 %v805, %v857
        %v877 = vadd.f32 %v806, %v871
        %v878 = vadd.f32 %v807, %v845
        %v879 = vadd.f32 %v808, %v859
        %v880 = vadd.f32 %v809, %v873
        %s881 = scalar_lea.vmem [#allocation5], 64
        %v882 = vld [vmem:[%s881] sm:$0xf]
        %v883 = vld [vmem:[%s881 + $0x4] sm:$0xf]
        %v886 = vunpack.c.l.b16 %v882
        %v887 = vunpack.c.l.b16 %v883
        %v888 = vpack.c.b16 %v887, %v886
        %889 = vrot.lane.b32.xlu0 %v341, 90
        %v890 = vpop.permute.xlu0 %889
        %891 = vrot.lane.b32.xlu0 %v342, 90
        %v892 = vpop.permute.xlu0 %891
        %893 = vrot.lane.b32.xlu0 %v343, 90
        %v894 = vpop.permute.xlu0 %893
        %vm895 = vcmask 736256
        %v896 = vsel %vm895, %v890, %v892
        %v897 = vsel %vm895, %v892, %v894
        %v902 = vsel %vm356, %v888, 0
        %904 = vmatpush.bf16.msra.mxu0 0
        %905 = vmatpush.bf16.msra.mxu0 0
        %906 = vmatpush.bf16.msra.mxu0 0
        %907 = vmatpush.bf16.msra.mxu0 0
        %908 = vmatpush.bf16.msra.mxu0 0
        %909 = vmatpush.bf16.msra.mxu0 0
        %910 = vmatpush.bf16.msra.mxu0 0
        %911 = vmatpush.bf16.msra.mxu0 %v896
        %912 = vmatmul.bf16.gmra.mxu0 %v902
        %v913 = vpop.f32.mrf.mxu0
        %v914 = vadd.f32 0.0, %v913
        %v915 = vpop.f32.mrf.mxu0
        %v916 = vadd.f32 0.0, %v915
        %917 = vdwg.mxu0
        %918 = vmatpush.bf16.msra.mxu0 0
        %919 = vmatpush.bf16.msra.mxu0 0
        %920 = vmatpush.bf16.msra.mxu0 0
        %921 = vmatpush.bf16.msra.mxu0 0
        %922 = vmatpush.bf16.msra.mxu0 0
        %923 = vmatpush.bf16.msra.mxu0 0
        %924 = vmatpush.bf16.msra.mxu0 0
        %925 = vmatpush.bf16.msra.mxu0 %v897
        %926 = vmatmul.bf16.gmra.mxu0 %v902
        %v927 = vpop.f32.mrf.mxu0
        %v928 = vadd.f32 0.0, %v927
        %v929 = vpop.f32.mrf.mxu0
        %v930 = vadd.f32 0.0, %v929
        %931 = vdwg.mxu0
        %932 = vmatpush.bf16.msra.mxu0 0
        %933 = vmatpush.bf16.msra.mxu0 0
        %934 = vmatpush.bf16.msra.mxu0 0
        %935 = vmatpush.bf16.msra.mxu0 0
        %936 = vmatpush.bf16.msra.mxu0 0
        %937 = vmatpush.bf16.msra.mxu0 0
        %938 = vmatpush.bf16.msra.mxu0 0
        %939 = vmatpush.bf16.msra.mxu0 %v894
        %940 = vmatmul.bf16.gmra.mxu0 %v902
        %v941 = vpop.f32.mrf.mxu0
        %v942 = vadd.f32 0.0, %v941
        %v943 = vpop.f32.mrf.mxu0
        %v944 = vadd.f32 0.0, %v943
        %945 = vdwg.mxu0
        %v946 = vadd.f32 %v875, %v914
        %v947 = vadd.f32 %v876, %v928
        %v948 = vadd.f32 %v877, %v942
        %v949 = vadd.f32 %v878, %v916
        %v950 = vadd.f32 %v879, %v930
        %v951 = vadd.f32 %v880, %v944
        %v952 = vld [vmem:[%s5] sm:$0x7]
        %v954 = vperm.slane %v952, 0
        %v955 = vperm.slane %v952, 1
        %v956 = vperm.slane %v952, 2
        %v960 = vmul.f32 %v946, %v954
        %v961 = vmul.f32 %v947, %v955
        %v962 = vmul.f32 %v948, %v956
        %v963 = vmul.f32 %v949, %v954
        %v964 = vmul.f32 %v950, %v955
        %v965 = vmul.f32 %v951, %v956
        %v966 = vadd.f32 %v960, %v961
        %vm967 = vcmask 261120
        %v968 = vsel %vm967, %v962, 0.0
        %v969 = vadd.f32 %v966, %v968
        %970 = vadd.xlane.f32.xlu0 %v969
        %v971 = vpop.xlane.xlu0 %970
        %v972 = vadd.f32 %v963, %v964
        %v973 = vsel %vm967, %v965, 0.0
        %v974 = vadd.f32 %v972, %v973
        %975 = vadd.xlane.f32.xlu0 %v974
        %v976 = vpop.xlane.xlu0 %975
        %v977 = vmul.f32 %v960, %v946
        %v978 = vmul.f32 %v961, %v947
        %v979 = vmul.f32 %v962, %v948
        %v980 = vmul.f32 %v963, %v949
        %v981 = vmul.f32 %v964, %v950
        %v982 = vmul.f32 %v965, %v951
        %v983 = vadd.f32 %v977, %v978
        %v984 = vsel %vm967, %v979, 0.0
        %v985 = vadd.f32 %v983, %v984
        %986 = vadd.xlane.f32.xlu0 %v985
        %v987 = vpop.xlane.xlu0 %986
        %v988 = vadd.f32 %v980, %v981
        %v989 = vsel %vm967, %v982, 0.0
        %v990 = vadd.f32 %v988, %v989
        %991 = vadd.xlane.f32.xlu0 %v990
        %v992 = vpop.xlane.xlu0 %991
        %v993 = vld [vmem:[%s2] sm:$0xff]
        %v994 = vld [vmem:[%s2 + $0x8] sm:$0xff]
        %v995 = vmul.f32 %v993, 256.0
        %v996 = vmul.f32 %v994, 256.0
        %v997 = vadd.f32 %v971, %v995
        %v998 = vadd.f32 %v976, %v996
        %v999 = vmul.f32 %v993, 2.0
        %v1000 = vmul.f32 %v994, 2.0
        %v1001 = vmul.f32 %v999, %v971
        %v1002 = vmul.f32 %v1000, %v976
        %v1003 = vadd.f32 %v987, %v1001
        %v1004 = vadd.f32 %v992, %v1002
        %v1005 = vmul.f32 %v993, %v993
        %v1006 = vmul.f32 %v994, %v994
        %v1007 = vmul.f32 %v1005, 256.0
        %v1008 = vmul.f32 %v1006, 256.0
        %v1009 = vadd.f32 %v1003, %v1007
        %v1010 = vadd.f32 %v1004, %v1008
        %v1011 = vld [vmem:[%s6] sm:$0xff]
        %v1012 = vld [vmem:[%s6 + $0x8] sm:$0xff]
        %v1014 = vsel %vm356, %v1011, 0
        %v1017 = vsel %vm356, %v1012, 0
        %1019 = vmatpush.msra.mxu0 0.0
        %1020 = vmatpush.msra.mxu0 0.0
        %1021 = vmatpush.msra.mxu0 0.0
        %1022 = vmatpush.msra.mxu0 0.0
        %1023 = vmatpush.msra.mxu0 0.0
        %1024 = vmatpush.msra.mxu0 0.0
        %1025 = vmatpush.msra.mxu0 0.0
        %1026 = vmatpush.msra.mxu0 0.0
        %1027 = vmatpush.msra.mxu0 0.0
        %1028 = vmatpush.msra.mxu0 0.0
        %1029 = vmatpush.msra.mxu0 0.0
        %1030 = vmatpush.msra.mxu0 0.0
        %1031 = vmatpush.msra.mxu0 0.0
        %1032 = vmatpush.msra.mxu0 0.0
        %1033 = vmatpush.msra.mxu0 %v998
        %1034 = vmatpush.msra.mxu0 %v997
        %1035 = vmatmul.f32.gmra.mxu0 %v1014
        %v1036 = vpop.f32.mrf.mxu0
        %v1037 = vadd.f32 0.0, %v1036
        %1038 = vmatmul.f32.gmra.mxu0 %v1017
        %v1039 = vpop.f32.mrf.mxu0
        %v1040 = vadd.f32 0.0, %v1039
        %1041 = vdwg.mxu0
        %1042 = vmatpush.msra.mxu0 0.0
        %1043 = vmatpush.msra.mxu0 0.0
        %1044 = vmatpush.msra.mxu0 0.0
        %1045 = vmatpush.msra.mxu0 0.0
        %1046 = vmatpush.msra.mxu0 0.0
        %1047 = vmatpush.msra.mxu0 0.0
        %1048 = vmatpush.msra.mxu0 0.0
        %1049 = vmatpush.msra.mxu0 0.0
        %1050 = vmatpush.msra.mxu0 0.0
        %1051 = vmatpush.msra.mxu0 0.0
        %1052 = vmatpush.msra.mxu0 0.0
        %1053 = vmatpush.msra.mxu0 0.0
        %1054 = vmatpush.msra.mxu0 0.0
        %1055 = vmatpush.msra.mxu0 0.0
        %1056 = vmatpush.msra.mxu0 %v1010
        %1057 = vmatpush.msra.mxu0 %v1009
        %1058 = vmatmul.f32.gmra.mxu0 %v1014
        %v1059 = vpop.f32.mrf.mxu0
        %v1060 = vadd.f32 0.0, %v1059
        %1061 = vmatmul.f32.gmra.mxu0 %v1017
        %v1062 = vpop.f32.mrf.mxu0
        %v1063 = vadd.f32 0.0, %v1062
        %1064 = vdwg.mxu0
        %v1065 = vmul.f32 %v1037, %v1037
        %v1066 = vmul.f32 %v1040, %v1040
        %v1067 = vsub.f32 %v1060, %v1065
        %v1068 = vsub.f32 %v1063, %v1066
        %v1069 = vmax.f32 %v1067, 0.0
        %v1070 = vmax.f32 %v1068, 0.0
        %v1071 = vadd.f32 %v1069, 1e-05
        %v1072 = vadd.f32 %v1070, 1e-05
        %v1073 = vrsqrt.pop %v1071
        %v1074 = vmul.f32 %v1073, %v1071
        %v1075 = vmul.f32 %v1074, %v1073
        %v1076 = vmul.f32 0.5, %v1075
        %v1077 = vsub.f32 1.5, %v1076
        %v1078 = vmul.f32 %v1073, %v1077
        %vm1079 = vweird.f32 %v1071
        %vm1080 = vweird.f32 %v1073
        %vm1081 = vmor %vm1079, %vm1080
        %v1082 = vsel %vm1081, %v1073, %v1078
        %v1083 = vrsqrt.pop %v1072
        %v1084 = vmul.f32 %v1083, %v1072
        %v1085 = vmul.f32 %v1084, %v1083
        %v1086 = vmul.f32 0.5, %v1085
        %v1087 = vsub.f32 1.5, %v1086
        %v1088 = vmul.f32 %v1083, %v1087
        %vm1089 = vweird.f32 %v1072
        %vm1090 = vweird.f32 %v1083
        %vm1091 = vmor %vm1089, %vm1090
        %v1092 = vsel %vm1091, %v1083, %v1088
        %v1093 = vld [vmem:[%s3] sm:$0xff]
        %v1094 = vld [vmem:[%s3 + $0x8] sm:$0xff]
        %v1095 = vmul.f32 %v1082, %v1093
        %v1096 = vmul.f32 %v1092, %v1094
        %v1097 = vsub.f32 %v993, %v1037
        %v1098 = vsub.f32 %v994, %v1040
        %v1099 = vmul.f32 %v1097, %v1095
        %v1100 = vmul.f32 %v1098, %v1096
        %v1101 = vld [vmem:[%s4] sm:$0xff]
        %v1102 = vld [vmem:[%s4 + $0x8] sm:$0xff]
        %v1103 = vadd.f32 %v1099, %v1101
        %v1104 = vadd.f32 %v1100, %v1102
        %1106 = vset.pattern.permute.xlu0 0
        %1107 = vperm.xlu0 %1106, %v1095
        %v1108 = vpop.permute.xlu0 %1107
        %1111 = vset.pattern.permute.xlu0 0
        %1112 = vperm.xlu0 %1111, %v1096
        %v1113 = vpop.permute.xlu0 %1112
        %v1115 = vmul.f32 %v946, %v1108
        %v1116 = vmul.f32 %v947, %v1108
        %v1117 = vmul.f32 %v948, %v1108
        %v1118 = vmul.f32 %v949, %v1113
        %v1119 = vmul.f32 %v950, %v1113
        %v1120 = vmul.f32 %v951, %v1113
        %1122 = vset.pattern.permute.xlu0 0
        %1123 = vperm.xlu0 %1122, %v1103
        %v1124 = vpop.permute.xlu0 %1123
        %1127 = vset.pattern.permute.xlu0 0
        %1128 = vperm.xlu0 %1127, %v1104
        %v1129 = vpop.permute.xlu0 %1128
        %v1131 = vadd.f32 %v1115, %v1124
        %v1132 = vadd.f32 %v1116, %v1124
        %v1133 = vadd.f32 %v1117, %v1124
        %v1134 = vadd.f32 %v1118, %v1129
        %v1135 = vadd.f32 %v1119, %v1129
        %v1136 = vadd.f32 %v1120, %v1129
        %v1137 = vxor.u32 %v1131, 2147483648
        %v1138 = vxor.u32 %v1132, 2147483648
        %v1139 = vxor.u32 %v1133, 2147483648
        %v1140 = vxor.u32 %v1134, 2147483648
        %v1141 = vxor.u32 %v1135, 2147483648
        %v1142 = vxor.u32 %v1136, 2147483648
        %v1143 = vmul.f32 %v1137, 1.442695
        %v1144 = vpow.pop %v1143
        %v1145 = vmul.f32 %v1138, 1.442695
        %v1146 = vpow.pop %v1145
        %v1147 = vmul.f32 %v1139, 1.442695
        %v1148 = vpow.pop %v1147
        %v1149 = vmul.f32 %v1140, 1.442695
        %v1150 = vpow.pop %v1149
        %v1151 = vmul.f32 %v1141, 1.442695
        %v1152 = vpow.pop %v1151
        %v1153 = vmul.f32 %v1142, 1.442695
        %v1154 = vpow.pop %v1153
        %v1155 = vadd.f32 %v1144, 1.0
        %v1156 = vadd.f32 %v1146, 1.0
        %v1157 = vadd.f32 %v1148, 1.0
        %v1158 = vadd.f32 %v1150, 1.0
        %v1159 = vadd.f32 %v1152, 1.0
        %v1160 = vadd.f32 %v1154, 1.0
        %v1161 = vrcp.pop %v1155
        %v1162 = vmul.f32 %v1155, %v1161
        %v1163 = vsub.f32 1.0, %v1162
        %v1164 = vmul.f32 %v1161, %v1163
        %v1165 = vadd.f32 %v1161, %v1164
        %vm1166 = vweird.f32 %v1155
        %vm1167 = vweird.f32 %v1161
        %vm1168 = vmor %vm1166, %vm1167
        %v1169 = vsel %vm1168, %v1161, %v1165
        %v1170 = vand.u32 2147483647, %v1155
        %vm1171 = vcmp.eq.f32.partialorder %v1170, 8.507059e+37
        %v1172 = vand.u32 %v1155, 2147483648
        %v1173 = vor.u32 1.1754944e-38, %v1172
        %v1174 = vsel %vm1171, %v1173, %v1169
        %v1175 = vmul.f32 1.0, %v1174
        %v1176 = vrcp.pop %v1156
        %v1177 = vmul.f32 %v1156, %v1176
        %v1178 = vsub.f32 1.0, %v1177
        %v1179 = vmul.f32 %v1176, %v1178
        %v1180 = vadd.f32 %v1176, %v1179
        %vm1181 = vweird.f32 %v1156
        %vm1182 = vweird.f32 %v1176
        %vm1183 = vmor %vm1181, %vm1182
        %v1184 = vsel %vm1183, %v1176, %v1180
        %v1185 = vand.u32 2147483647, %v1156
        %vm1186 = vcmp.eq.f32.partialorder %v1185, 8.507059e+37
        %v1187 = vand.u32 %v1156, 2147483648
        %v1188 = vor.u32 1.1754944e-38, %v1187
        %v1189 = vsel %vm1186, %v1188, %v1184
        %v1190 = vmul.f32 1.0, %v1189
        %v1191 = vrcp.pop %v1157
        %v1192 = vmul.f32 %v1157, %v1191
        %v1193 = vsub.f32 1.0, %v1192
        %v1194 = vmul.f32 %v1191, %v1193
        %v1195 = vadd.f32 %v1191, %v1194
        %vm1196 = vweird.f32 %v1157
        %vm1197 = vweird.f32 %v1191
        %vm1198 = vmor %vm1196, %vm1197
        %v1199 = vsel %vm1198, %v1191, %v1195
        %v1200 = vand.u32 2147483647, %v1157
        %vm1201 = vcmp.eq.f32.partialorder %v1200, 8.507059e+37
        %v1202 = vand.u32 %v1157, 2147483648
        %v1203 = vor.u32 1.1754944e-38, %v1202
        %v1204 = vsel %vm1201, %v1203, %v1199
        %v1205 = vmul.f32 1.0, %v1204
        %v1206 = vrcp.pop %v1158
        %v1207 = vmul.f32 %v1158, %v1206
        %v1208 = vsub.f32 1.0, %v1207
        %v1209 = vmul.f32 %v1206, %v1208
        %v1210 = vadd.f32 %v1206, %v1209
        %vm1211 = vweird.f32 %v1158
        %vm1212 = vweird.f32 %v1206
        %vm1213 = vmor %vm1211, %vm1212
        %v1214 = vsel %vm1213, %v1206, %v1210
        %v1215 = vand.u32 2147483647, %v1158
        %vm1216 = vcmp.eq.f32.partialorder %v1215, 8.507059e+37
        %v1217 = vand.u32 %v1158, 2147483648
        %v1218 = vor.u32 1.1754944e-38, %v1217
        %v1219 = vsel %vm1216, %v1218, %v1214
        %v1220 = vmul.f32 1.0, %v1219
        %v1221 = vrcp.pop %v1159
        %v1222 = vmul.f32 %v1159, %v1221
        %v1223 = vsub.f32 1.0, %v1222
        %v1224 = vmul.f32 %v1221, %v1223
        %v1225 = vadd.f32 %v1221, %v1224
        %vm1226 = vweird.f32 %v1159
        %vm1227 = vweird.f32 %v1221
        %vm1228 = vmor %vm1226, %vm1227
        %v1229 = vsel %vm1228, %v1221, %v1225
        %v1230 = vand.u32 2147483647, %v1159
        %vm1231 = vcmp.eq.f32.partialorder %v1230, 8.507059e+37
        %v1232 = vand.u32 %v1159, 2147483648
        %v1233 = vor.u32 1.1754944e-38, %v1232
        %v1234 = vsel %vm1231, %v1233, %v1229
        %v1235 = vmul.f32 1.0, %v1234
        %v1236 = vrcp.pop %v1160
        %v1237 = vmul.f32 %v1160, %v1236
        %v1238 = vsub.f32 1.0, %v1237
        %v1239 = vmul.f32 %v1236, %v1238
        %v1240 = vadd.f32 %v1236, %v1239
        %vm1241 = vweird.f32 %v1160
        %vm1242 = vweird.f32 %v1236
        %vm1243 = vmor %vm1241, %vm1242
        %v1244 = vsel %vm1243, %v1236, %v1240
        %v1245 = vand.u32 2147483647, %v1160
        %vm1246 = vcmp.eq.f32.partialorder %v1245, 8.507059e+37
        %v1247 = vand.u32 %v1160, 2147483648
        %v1248 = vor.u32 1.1754944e-38, %v1247
        %v1249 = vsel %vm1246, %v1248, %v1244
        %v1250 = vmul.f32 1.0, %v1249
        %v1251 = vmul.f32 %v1131, %v1175
        %v1252 = vmul.f32 %v1132, %v1190
        %v1253 = vmul.f32 %v1133, %v1205
        %v1254 = vmul.f32 %v1134, %v1220
        %v1255 = vmul.f32 %v1135, %v1235
        %v1256 = vmul.f32 %v1136, %v1250
        %1257 = vst.msk [vmem:[%s315] sm:$0xff] %vm356, %v1251
        %1258 = vst.msk [vmem:[%s315 + $0x10] sm:$0xff] %vm356, %v1254
        %1261 = vrot.lane.b32.xlu0 %v1251, 126
        %v1262 = vpop.permute.xlu0 %1261
        %1263 = vrot.lane.b32.xlu0 %v1254, 126
        %v1264 = vpop.permute.xlu0 %1263
        %vm1267 = vcmask 261248
        %1268 = vst.msk [vmem:[%s315] sm:$0xff] %vm1267, %v1262
        %1269 = vst.msk [vmem:[%s315 + $0x10] sm:$0xff] %vm1267, %v1264
        %1270 = vrot.lane.b32.xlu0 %v1251, 124
        %v1271 = vpop.permute.xlu0 %1270
        %1272 = vrot.lane.b32.xlu0 %v1254, 124
        %v1273 = vpop.permute.xlu0 %1272
        %vm1276 = vcmask 392448
        %1277 = vst.msk [vmem:[%s315] sm:$0xff] %vm1276, %v1271
        %1278 = vst.msk [vmem:[%s315 + $0x10] sm:$0xff] %vm1276, %v1273
        %1279 = vrot.lane.b32.xlu0 %v1251, 122
        %v1280 = vpop.permute.xlu0 %1279
        %1281 = vrot.lane.b32.xlu0 %v1254, 122
        %v1282 = vpop.permute.xlu0 %1281
        %vm1285 = vcmask 523648
        %1286 = vst.msk [vmem:[%s315] sm:$0xff] %vm1285, %v1280
        %1287 = vst.msk [vmem:[%s315 + $0x10] sm:$0xff] %vm1285, %v1282
        %1288 = vrot.lane.b32.xlu0 %v1251, 120
        %v1289 = vpop.permute.xlu0 %1288
        %1290 = vrot.lane.b32.xlu0 %v1254, 120
        %v1291 = vpop.permute.xlu0 %1290
        %vm1294 = vcmask 654848
        %1295 = vst.msk [vmem:[%s315] sm:$0xff] %vm1294, %v1289
        %1296 = vst.msk [vmem:[%s315 + $0x10] sm:$0xff] %vm1294, %v1291
        %1297 = vrot.lane.b32.xlu0 %v1251, 118
        %v1298 = vpop.permute.xlu0 %1297
        %1299 = vrot.lane.b32.xlu0 %v1254, 118
        %v1300 = vpop.permute.xlu0 %1299
        %vm1303 = vcmask 786048
        %1304 = vst.msk [vmem:[%s315] sm:$0xff] %vm1303, %v1298
        %1305 = vst.msk [vmem:[%s315 + $0x10] sm:$0xff] %vm1303, %v1300
        %1306 = vrot.lane.b32.xlu0 %v1251, 116
        %v1307 = vpop.permute.xlu0 %1306
        %1308 = vrot.lane.b32.xlu0 %v1254, 116
        %v1309 = vpop.permute.xlu0 %1308
        %vm1312 = vcmask 917248
        %1313 = vst.msk [vmem:[%s315] sm:$0xff] %vm1312, %v1307
        %1314 = vst.msk [vmem:[%s315 + $0x10] sm:$0xff] %vm1312, %v1309
        %1317 = vrot.lane.b32.xlu0 %v1251, 114
        %v1318 = vpop.permute.xlu0 %1317
        %1319 = vrot.lane.b32.xlu0 %v1252, 114
        %v1320 = vpop.permute.xlu0 %1319
        %1321 = vrot.lane.b32.xlu0 %v1254, 114
        %v1322 = vpop.permute.xlu0 %1321
        %1323 = vrot.lane.b32.xlu0 %v1255, 114
        %v1324 = vpop.permute.xlu0 %1323
        %vm1325 = vcmask 932864
        %v1326 = vsel %vm1325, %v1318, %v1320
        %v1327 = vsel %vm1325, %v1322, %v1324
        %vm1330 = vcmask 1048448
        %1331 = vst.msk [vmem:[%s315] sm:$0xff] %vm1330, %v1326
        %1332 = vst.msk [vmem:[%s315 + $0x10] sm:$0xff] %vm1330, %v1327
        %1333 = vrot.lane.b32.xlu0 %v1252, 112
        %v1334 = vpop.permute.xlu0 %1333
        %1335 = vrot.lane.b32.xlu0 %v1255, 112
        %v1336 = vpop.permute.xlu0 %1335
        %1339 = vst.msk [vmem:[%s315 + $0x8] sm:$0xff] %vm356, %v1334
        %1340 = vst.msk [vmem:[%s315 + $0x18] sm:$0xff] %vm356, %v1336
        %1341 = vrot.lane.b32.xlu0 %v1252, 110
        %v1342 = vpop.permute.xlu0 %1341
        %1343 = vrot.lane.b32.xlu0 %v1255, 110
        %v1344 = vpop.permute.xlu0 %1343
        %1347 = vst.msk [vmem:[%s315 + $0x8] sm:$0xff] %vm1267, %v1342
        %1348 = vst.msk [vmem:[%s315 + $0x18] sm:$0xff] %vm1267, %v1344
        %1349 = vrot.lane.b32.xlu0 %v1252, 108
        %v1350 = vpop.permute.xlu0 %1349
        %1351 = vrot.lane.b32.xlu0 %v1255, 108
        %v1352 = vpop.permute.xlu0 %1351
        %1355 = vst.msk [vmem:[%s315 + $0x8] sm:$0xff] %vm1276, %v1350
        %1356 = vst.msk [vmem:[%s315 + $0x18] sm:$0xff] %vm1276, %v1352
        %1357 = vrot.lane.b32.xlu0 %v1252, 106
        %v1358 = vpop.permute.xlu0 %1357
        %1359 = vrot.lane.b32.xlu0 %v1255, 106
        %v1360 = vpop.permute.xlu0 %1359
        %1363 = vst.msk [vmem:[%s315 + $0x8] sm:$0xff] %vm1285, %v1358
        %1364 = vst.msk [vmem:[%s315 + $0x18] sm:$0xff] %vm1285, %v1360
        %1365 = vrot.lane.b32.xlu0 %v1252, 104
        %v1366 = vpop.permute.xlu0 %1365
        %1367 = vrot.lane.b32.xlu0 %v1255, 104
        %v1368 = vpop.permute.xlu0 %1367
        %1371 = vst.msk [vmem:[%s315 + $0x8] sm:$0xff] %vm1294, %v1366
        %1372 = vst.msk [vmem:[%s315 + $0x18] sm:$0xff] %vm1294, %v1368
        %1373 = vrot.lane.b32.xlu0 %v1252, 102
        %v1374 = vpop.permute.xlu0 %1373
        %1375 = vrot.lane.b32.xlu0 %v1255, 102
        %v1376 = vpop.permute.xlu0 %1375
        %1379 = vst.msk [vmem:[%s315 + $0x8] sm:$0xff] %vm1303, %v1374
        %1380 = vst.msk [vmem:[%s315 + $0x18] sm:$0xff] %vm1303, %v1376
        %1383 = vrot.lane.b32.xlu0 %v1252, 100
        %v1384 = vpop.permute.xlu0 %1383
        %1385 = vrot.lane.b32.xlu0 %v1253, 100
        %v1386 = vpop.permute.xlu0 %1385
        %1387 = vrot.lane.b32.xlu0 %v1255, 100
        %v1388 = vpop.permute.xlu0 %1387
        %1389 = vrot.lane.b32.xlu0 %v1256, 100
        %v1390 = vpop.permute.xlu0 %1389
        %vm1391 = vcmask 818176
        %v1392 = vsel %vm1391, %v1384, %v1386
        %v1393 = vsel %vm1391, %v1388, %v1390
        %1396 = vst.msk [vmem:[%s315 + $0x8] sm:$0xff] %vm1312, %v1392
        %1397 = vst.msk [vmem:[%s315 + $0x18] sm:$0xff] %vm1312, %v1393
        %1398 = vrot.lane.b32.xlu0 %v1253, 98
        %v1399 = vpop.permute.xlu0 %1398
        %1400 = vrot.lane.b32.xlu0 %v1256, 98
        %v1401 = vpop.permute.xlu0 %1400
        %1404 = vst.msk [vmem:[%s315 + $0x8] sm:$0xff] %vm1330, %v1399
        %1405 = vst.msk [vmem:[%s315 + $0x18] sm:$0xff] %vm1330, %v1401
        %s1406 = sand.u32 %s185, 1
        %s1407 = scalar_lea.sflag [#allocation4], %s1406
        %s1408 = sand.u32 %s185, 1
        %s1409 = smul.addr %s1408, 32
        %s1410 = scalar_lea.vmem [#allocation7], %s1409
        // Predicated region
        $region57: #{tpu_custom_call.1} parent=47 // pred_check
          %p1411 = pneg %p195
        $region58: #{tpu_custom_call.1} parent=47 // pred_check_branch
          %1413 = sbr.rel (%p1411) target = $region60
        $region59: #{tpu_custom_call.1} parent=47 // pred_region
          %1415 = vsyncadd %s1407, 0
          %s1416 = smul.addr %s25, 4
          %s1417 = smul.addr %s1416, 8
          %s1418 = scalar_lea.hbm %s7, %s1417
          %s1419 = sshll.u32 %s1410, 4
          %s1420 = int_to_ptr.vmem [resolvable:$true] %s1419
          %s1421 = sshll.u32 %s1418, 4
          %s1422 = int_to_ptr.hbm [resolvable:$true] %s1421
          %1427 = dma.vmem_to_hbm [thread:$0]  %s1420, 512, %s1422, %s1407, 256, 256, 16
        $region60: #{tpu_custom_call.1} parent=47 // pred_fallthru
          _
      $region48: #{tpu_custom_call.1} parent=5 // pred_fallthru
        _
      %p1428 = scmp.le.s32.totalorder 2, %s20
      // Predicated region
      $region61: #{tpu_custom_call.1} parent=5 // pred_check
        %p1429 = pneg %p1428
      $region62: #{tpu_custom_call.1} parent=5 // pred_check_branch
        %1431 = sbr.rel (%p1429) target = $region64
      $region63: #{tpu_custom_call.1} parent=5 // pred_region
        %s1432 = ssub.s32 %s20, 2
        // Predicated region
        $region65: #{tpu_custom_call.1} parent=63 // pred_check
          %p1433 = pneg %p201
        $region66: #{tpu_custom_call.1} parent=63 // pred_check_branch
          %1435 = sbr.rel (%p1433) target = $region68
        $region67: #{tpu_custom_call.1} parent=63 // pred_region
          %s1436 = sand.u32 %s186, 1
          %s1437 = scalar_lea.sflag [#allocation4], %s1436
          %s1438 = sand.u32 %s186, 1
          %s1439 = smul.addr %s1438, 32
          %s1440 = scalar_lea.vmem [#allocation7], %s1439
          %1442 = dma.done %s1437, 512
        $region68: #{tpu_custom_call.1} parent=63 // pred_fallthru
          _
      $region64: #{tpu_custom_call.1} parent=5 // pred_fallthru
        _
    $region6: #{tpu_custom_call.1} parent=1 // loop_footer
      %s24 = sadd.s32 1, %s20
    $region7: #{tpu_custom_call.1} parent=1 // loop_footer_branch
      %19 = sbr.rel target = $region3
    $region8: #{tpu_custom_call.1} parent=1 // loop_exit
      _
    %1443 = vsyncpa [#allocation3], 1
    %s1444 = scalar_lea.sflag [#allocation3], 1
    %1445 = vsyncpa %s1444, 1
    %1446 = vsyncpa [#allocation6], 1
    %1447 = vsyncpa [#allocation4], 1
    %s1448 = scalar_lea.sflag [#allocation4], 1
    %1449 = vsyncpa %s1448, 1

</llo_original>
